<compile_context>
chip_gen: v5e
topology: v5e:2x2
jax: 0.10.0
libtpu: 0.0.40
codegen_flags: <defaults>
</compile_context>

<pallas_src>
import jax
import jax.numpy as jnp
from jax.experimental import pallas as pl
from jax.experimental.pallas import tpu as pltpu

# TODO(synk): cfg.* is undefined in the original file; fixed small values here.
LATENT_DIM = 32
E_HIDDEN = 64
D_HIDDEN = 64
IN_DIM = 784            # 28 * 28
OUT_PAD = 896           # 7 * 128 : lane-dense padded decoder output width
MULV_PAD = 128          # lane-dense padded [mu | logvar] width (logical 64)
TILE_B_MAX = 1024       # large tiles amortize ~0.35 us/step overhead; VMEM-safe


def _round_up(n, m):
    return ((n + m - 1) // m) * m


def _choose_tile_b(B):
    """Big tile for overhead amortization, but >=4 grid steps when B allows
    (>=2 steps per TensorCore on v7x keeps both cores busy and DMAs overlapped)."""
    tb = min(TILE_B_MAX, _round_up(B, 16))      # 16: bf16 sublane packing
    if B >= 4 * 16:
        tb = min(tb, max(16, (B // 4) // 16 * 16))
    return tb


def _vae_kernel(x_ref, eps_ref,
                w_e1_ref, b_e1_ref,
                w_e2_ref, b_e2_ref,
                w_d1_ref, b_d1_ref,
                w_d2_ref, b_d2_ref,
                mulv_ref, dec_ref):
    """One batch tile: x (tb, 784) f32 (cast to bf16 in-kernel), eps (tb, 32) f32."""
    bf16 = jnp.bfloat16

    # Encoder layer 1: Linear(784, E_HIDDEN) + ReLU  (bf16 MXU, f32 accumulate)
    h = jnp.dot(x_ref[...].astype(bf16), w_e1_ref[...],
                preferred_element_type=jnp.float32) + b_e1_ref[...]
    h = jnp.maximum(h, 0.0)

    # Fused encoder head: Linear(E_HIDDEN, 2*LATENT) -> packed [mu | logvar],
    # padded to 128 lanes (extra columns are zeros -> harmless).
    mulv = jnp.dot(h.astype(bf16), w_e2_ref[...],
                   preferred_element_type=jnp.float32) + b_e2_ref[...]
    mu = mulv[:, :LATENT_DIM]
    logvar = mulv[:, LATENT_DIM:2 * LATENT_DIM]

    # Reparameterization (training path), f32 elementwise (v5e-safe).
    z = mu + eps_ref[...] * jnp.exp(0.5 * logvar)

    # BernoulliDecoder: Linear(LATENT, D_HIDDEN) -> ReLU -> Linear(D_HIDDEN, 896) -> Sigmoid
    hd = jnp.dot(z.astype(bf16), w_d1_ref[...],
                 preferred_element_type=jnp.float32) + b_d1_ref[...]
    hd = jnp.maximum(hd, 0.0)
    logits = jnp.dot(hd.astype(bf16), w_d2_ref[...],
                     preferred_element_type=jnp.float32) + b_d2_ref[...]

    mulv_ref[...] = mulv                                   # f32, 128-lane dense
    # sigmoid(x) = 0.5*tanh(0.5*x) + 0.5 : single EUP pass per vreg; bf16 store
    # halves the dominant HBM writeback.  (Kept f32 through the VPU: v5e-safe.)
    dec_ref[...] = (0.5 * jnp.tanh(0.5 * logits) + 0.5).astype(bf16)


def init_params(key):
    """f32 logical params mimicking torch.nn.Linear default init.

    Weights are stored [in_features, out_features] so the kernel computes
    y = x @ W + b on the MXU.
    """
    def linear(key, fan_in, fan_out):
        kw, kb = jax.random.split(key)
        bound = 1.0 / jnp.sqrt(fan_in)
        w = jax.random.uniform(kw, (fan_in, fan_out), jnp.float32, -bound, bound)
        b = jax.random.uniform(kb, (1, fan_out), jnp.float32, -bound, bound)
        return w, b

    k1, k2, k3, k4 = jax.random.split(key, 4)
    w_e1, b_e1 = linear(k1, IN_DIM, E_HIDDEN)
    w_e2, b_e2 = linear(k2, E_HIDDEN, 2 * LATENT_DIM)   # fused (mu | logvar)
    w_d1, b_d1 = linear(k3, LATENT_DIM, D_HIDDEN)
    w_d2, b_d2 = linear(k4, D_HIDDEN, IN_DIM)
    return (w_e1, b_e1, w_e2, b_e2, w_d1, b_d1, w_d2, b_d2)


def prepare_params(params):
    """One-time kernel-side layout prep: bf16 weights, f32 biases,
    pad encoder head 64 -> 128 lanes and decoder output 784 -> 896 lanes."""
    w_e1, b_e1, w_e2, b_e2, w_d1, b_d1, w_d2, b_d2 = params
    bf16 = jnp.bfloat16

    mulv_pad = MULV_PAD - 2 * LATENT_DIM
    w_e2p = jnp.pad(w_e2, ((0, 0), (0, mulv_pad))).astype(bf16)
    b_e2p = jnp.pad(b_e2, ((0, 0), (0, mulv_pad)))

    out_pad = OUT_PAD - IN_DIM
    w_d2p = jnp.pad(w_d2, ((0, 0), (0, out_pad))).astype(bf16)
    b_d2p = jnp.pad(b_d2, ((0, 0), (0, out_pad)))

    return (w_e1.astype(bf16), b_e1,
            w_e2p, b_e2p,
            w_d1.astype(bf16), b_d1,
            w_d2p, b_d2p)


def vae_forward(x_img, eps, prepped_params, tile_b=None):
    """x_img: (B, 1, 28, 28) f32.  eps: (B, LATENT_DIM) f32 ~ N(0,1).

    Returns (mu f32, logvar f32, dec bf16)."""
    B = x_img.shape[0]
    x = x_img.reshape(-1, IN_DIM)                 # x.view(-1, 784); stays f32,
                                                  # bf16 cast happens in-kernel.

    if tile_b is None:
        tile_b = _choose_tile_b(B)
    num_tiles = pl.cdiv(B, tile_b)
    B_pad = num_tiles * tile_b
    if B_pad != B:
        x = jnp.pad(x, ((0, B_pad - B), (0, 0)))
        eps_p = jnp.pad(eps, ((0, B_pad - B), (0, 0)))
    else:
        eps_p = eps

    (w_e1, b_e1, w_e2, b_e2, w_d1, b_d1, w_d2, b_d2) = prepped_params

    # Tiled (batch) inputs/outputs; parameters map to block (0,0) so Mosaic
    # keeps them VMEM-resident across grid steps (constant index_map -> no
    # re-DMA; explicit pl.Buffered(1) not needed).
    def _resident(shape):
        return pl.BlockSpec(shape, lambda i: (0, 0))

    in_specs = [
        pl.BlockSpec((tile_b, IN_DIM), lambda i: (i, 0)),        # x (f32)
        pl.BlockSpec((tile_b, LATENT_DIM), lambda i: (i, 0)),    # eps (f32)
        _resident(w_e1.shape), _resident(b_e1.shape),
        _resident(w_e2.shape), _resident(b_e2.shape),
        _resident(w_d1.shape), _resident(b_d1.shape),
        _resident(w_d2.shape), _resident(b_d2.shape),
    ]
    out_specs = (
        pl.BlockSpec((tile_b, MULV_PAD), lambda i: (i, 0)),      # packed [mu|lv|pad]
        pl.BlockSpec((tile_b, OUT_PAD), lambda i: (i, 0)),       # padded decoder out
    )
    out_shape = (
        jax.ShapeDtypeStruct((B_pad, MULV_PAD), jnp.float32),
        jax.ShapeDtypeStruct((B_pad, OUT_PAD), jnp.bfloat16),    # bf16 writeback
    )

    flops = 2 * B_pad * (IN_DIM * E_HIDDEN + E_HIDDEN * MULV_PAD
                         + LATENT_DIM * D_HIDDEN + D_HIDDEN * OUT_PAD)
    transcendentals = B_pad * (LATENT_DIM + OUT_PAD)             # exp + tanh
    weight_bytes = sum(int(a.size) * a.dtype.itemsize for a in prepped_params)
    bytes_accessed = (B_pad * (IN_DIM * 4 + LATENT_DIM * 4       # x(f32) + eps(f32)
                               + MULV_PAD * 4 + OUT_PAD * 2)     # mulv f32 + dec bf16
                      + weight_bytes)

    fn = pl.pallas_call(
        _vae_kernel,
        out_shape=out_shape,
        grid=(num_tiles,),
        in_specs=in_specs,
        out_specs=out_specs,
        compiler_params=pltpu.CompilerParams(
            dimension_semantics=("parallel",),
            vmem_limit_bytes=32 * 1024 * 1024,
        ),
        cost_estimate=pl.CostEstimate(
            flops=flops,
            transcendentals=transcendentals,
            bytes_accessed=bytes_accessed,
        ),
    )
    mulv, dec_pad = fn(x, eps_p, *prepped_params)

    # TODO(synk): downstream consumers could take the packed/padded slabs
    # directly to skip these un-fused wrapper slices.
    mu = mulv[:B, :LATENT_DIM]
    logvar = mulv[:B, LATENT_DIM:2 * LATENT_DIM]
    dec = dec_pad[:B, :IN_DIM]
    return mu, logvar, dec


def vae_reference(x_img, eps, params):
    """Pure-JAX reference mirroring the kernel's bf16-matmul / f32-elementwise policy."""
    w_e1, b_e1, w_e2, b_e2, w_d1, b_d1, w_d2, b_d2 = params
    bf16 = jnp.bfloat16
    x = x_img.reshape(-1, IN_DIM)
    h = jnp.maximum(
        jnp.dot(x.astype(bf16), w_e1.astype(bf16),
                preferred_element_type=jnp.float32) + b_e1, 0.0)
    mulv = jnp.dot(h.astype(bf16), w_e2.astype(bf16),
                   preferred_element_type=jnp.float32) + b_e2
    mu, logvar = mulv[:, :LATENT_DIM], mulv[:, LATENT_DIM:]
    z = mu + eps * jnp.exp(0.5 * logvar)
    hd = jnp.maximum(
        jnp.dot(z.astype(bf16), w_d1.astype(bf16),
                preferred_element_type=jnp.float32) + b_d1, 0.0)
    logits = jnp.dot(hd.astype(bf16), w_d2.astype(bf16),
                     preferred_element_type=jnp.float32) + b_d2
    return mu, logvar, jax.nn.sigmoid(logits)


if __name__ == "__main__":
    key = jax.random.PRNGKey(0)
    k_x, k_eps, k_p = jax.random.split(key, 3)

    # B=64 -> auto tile_b=16, 4 grid steps (>=2 per v7x TensorCore), no padding.
    B = 64
    x_img = jax.random.uniform(k_x, (B, 1, 28, 28), jnp.float32)   # MNIST-like, [0,1]
    eps = jax.random.normal(k_eps, (B, LATENT_DIM), jnp.float32)
    params = init_params(k_p)
    prepped = prepare_params(params)

    mu, logvar, dec = jax.block_until_ready(vae_forward(x_img, eps, prepped))

    mu_r, logvar_r, dec_r = vae_reference(x_img, eps, params)
    assert mu.shape == (B, LATENT_DIM) and logvar.shape == (B, LATENT_DIM)
    assert dec.shape == (B, IN_DIM) and dec.dtype == jnp.bfloat16
    assert jnp.allclose(mu, mu_r, atol=1e-2, rtol=1e-2)
    assert jnp.allclose(logvar, logvar_r, atol=1e-2, rtol=1e-2)
    assert jnp.allclose(dec.astype(jnp.float32), dec_r, atol=2e-2, rtol=2e-2)

    print("KERNEL_OK")
</pallas_src>

<mosaic_0001>
module attributes {stable_mosaic.version = 11 : i64} {
  func.func @_vae_kernel(%arg0: i32, %arg1: memref<16x784xf32, #tpu.memory_space<vmem>>, %arg2: memref<16x32xf32, #tpu.memory_space<vmem>>, %arg3: memref<784x64xbf16, #tpu.memory_space<vmem>>, %arg4: memref<1x64xf32, #tpu.memory_space<vmem>>, %arg5: memref<64x128xbf16, #tpu.memory_space<vmem>>, %arg6: memref<1x128xf32, #tpu.memory_space<vmem>>, %arg7: memref<32x64xbf16, #tpu.memory_space<vmem>>, %arg8: memref<1x64xf32, #tpu.memory_space<vmem>>, %arg9: memref<64x896xbf16, #tpu.memory_space<vmem>>, %arg10: memref<1x896xf32, #tpu.memory_space<vmem>>, %arg11: memref<16x128xf32, #tpu.memory_space<vmem>>, %arg12: memref<16x896xbf16, #tpu.memory_space<vmem>>) attributes {dimension_semantics = [#tpu.dimension_semantics<parallel>], iteration_bounds = array<i64: 4>, scalar_prefetch = 0 : i64, scratch_operands = 0 : i64, tpu.core_type = #tpu.core_type<tc>, window_params = [{transform_indices = @transform_0, window_bounds = array<i64: 16, 784>}, {transform_indices = @transform_1, window_bounds = array<i64: 16, 32>}, {pipeline_mode = #tpu.pipeline_mode<synchronous>, transform_indices = @transform_2, window_bounds = array<i64: 784, 64>}, {pipeline_mode = #tpu.pipeline_mode<synchronous>, transform_indices = @transform_3, window_bounds = array<i64: 1, 64>}, {pipeline_mode = #tpu.pipeline_mode<synchronous>, transform_indices = @transform_4, window_bounds = array<i64: 64, 128>}, {pipeline_mode = #tpu.pipeline_mode<synchronous>, transform_indices = @transform_5, window_bounds = array<i64: 1, 128>}, {pipeline_mode = #tpu.pipeline_mode<synchronous>, transform_indices = @transform_6, window_bounds = array<i64: 32, 64>}, {pipeline_mode = #tpu.pipeline_mode<synchronous>, transform_indices = @transform_7, window_bounds = array<i64: 1, 64>}, {pipeline_mode = #tpu.pipeline_mode<synchronous>, transform_indices = @transform_8, window_bounds = array<i64: 64, 896>}, {pipeline_mode = #tpu.pipeline_mode<synchronous>, transform_indices = @transform_9, window_bounds = array<i64: 1, 896>}, {transform_indices = @transform_10, window_bounds = array<i64: 16, 128>}, {transform_indices = @transform_11, window_bounds = array<i64: 16, 896>}]} {
    %c0 = arith.constant 0 : index
    %c0_0 = arith.constant 0 : index
    %0 = vector.load %arg1[%c0, %c0_0] : memref<16x784xf32, #tpu.memory_space<vmem>>, vector<16x784xf32>
    %1 = arith.truncf %0 : vector<16x784xf32> to vector<16x784xbf16>
    %c0_1 = arith.constant 0 : index
    %c0_2 = arith.constant 0 : index
    %2 = vector.load %arg3[%c0_1, %c0_2] : memref<784x64xbf16, #tpu.memory_space<vmem>>, vector<784x64xbf16>
    %cst = arith.constant dense<0.000000e+00> : vector<16x64xf32>
    %3 = tpu.matmul %1, %2, %cst {dimension_numbers = #tpu.dot_dimension_numbers<[1], [0], [0], [1], [0, 0, 1, 1], [], []>} : vector<16x784xbf16>, vector<784x64xbf16>, vector<16x64xf32> -> vector<16x64xf32>
    %c0_3 = arith.constant 0 : index
    %c0_4 = arith.constant 0 : index
    %4 = vector.load %arg4[%c0_3, %c0_4] : memref<1x64xf32, #tpu.memory_space<vmem>>, vector<1x64xf32>
    %5 = vector.broadcast %4 : vector<1x64xf32> to vector<16x64xf32>
    %6 = arith.addf %3, %5 : vector<16x64xf32>
    %cst_5 = arith.constant 0.000000e+00 : f32
    %7 = vector.broadcast %cst_5 : f32 to vector<16x64xf32>
    %8 = arith.maximumf %6, %7 : vector<16x64xf32>
    %9 = arith.truncf %8 : vector<16x64xf32> to vector<16x64xbf16>
    %c0_6 = arith.constant 0 : index
    %c0_7 = arith.constant 0 : index
    %10 = vector.load %arg5[%c0_6, %c0_7] : memref<64x128xbf16, #tpu.memory_space<vmem>>, vector<64x128xbf16>
    %cst_8 = arith.constant dense<0.000000e+00> : vector<16x128xf32>
    %11 = tpu.matmul %9, %10, %cst_8 {dimension_numbers = #tpu.dot_dimension_numbers<[1], [0], [0], [1], [0, 0, 1, 1], [], []>} : vector<16x64xbf16>, vector<64x128xbf16>, vector<16x128xf32> -> vector<16x128xf32>
    %c0_9 = arith.constant 0 : index
    %c0_10 = arith.constant 0 : index
    %12 = vector.load %arg6[%c0_9, %c0_10] : memref<1x128xf32, #tpu.memory_space<vmem>>, vector<1x128xf32>
    %13 = vector.broadcast %12 : vector<1x128xf32> to vector<16x128xf32>
    %14 = arith.addf %11, %13 : vector<16x128xf32>
    %15 = vector.extract_strided_slice %14 {offsets = [0, 0], sizes = [16, 32], strides = [1, 1]} : vector<16x128xf32> to vector<16x32xf32>
    %16 = vector.extract_strided_slice %14 {offsets = [0, 32], sizes = [16, 32], strides = [1, 1]} : vector<16x128xf32> to vector<16x32xf32>
    %c0_11 = arith.constant 0 : index
    %c0_12 = arith.constant 0 : index
    %17 = vector.load %arg2[%c0_11, %c0_12] : memref<16x32xf32, #tpu.memory_space<vmem>>, vector<16x32xf32>
    %cst_13 = arith.constant 5.000000e-01 : f32
    %18 = vector.broadcast %cst_13 : f32 to vector<16x32xf32>
    %19 = arith.mulf %18, %16 : vector<16x32xf32>
    %20 = math.exp %19 : vector<16x32xf32>
    %21 = arith.mulf %17, %20 : vector<16x32xf32>
    %22 = arith.addf %15, %21 : vector<16x32xf32>
    %23 = arith.truncf %22 : vector<16x32xf32> to vector<16x32xbf16>
    %c0_14 = arith.constant 0 : index
    %c0_15 = arith.constant 0 : index
    %24 = vector.load %arg7[%c0_14, %c0_15] : memref<32x64xbf16, #tpu.memory_space<vmem>>, vector<32x64xbf16>
    %cst_16 = arith.constant dense<0.000000e+00> : vector<16x64xf32>
    %25 = tpu.matmul %23, %24, %cst_16 {dimension_numbers = #tpu.dot_dimension_numbers<[1], [0], [0], [1], [0, 0, 1, 1], [], []>} : vector<16x32xbf16>, vector<32x64xbf16>, vector<16x64xf32> -> vector<16x64xf32>
    %c0_17 = arith.constant 0 : index
    %c0_18 = arith.constant 0 : index
    %26 = vector.load %arg8[%c0_17, %c0_18] : memref<1x64xf32, #tpu.memory_space<vmem>>, vector<1x64xf32>
    %27 = vector.broadcast %26 : vector<1x64xf32> to vector<16x64xf32>
    %28 = arith.addf %25, %27 : vector<16x64xf32>
    %cst_19 = arith.constant 0.000000e+00 : f32
    %29 = vector.broadcast %cst_19 : f32 to vector<16x64xf32>
    %30 = arith.maximumf %28, %29 : vector<16x64xf32>
    %31 = arith.truncf %30 : vector<16x64xf32> to vector<16x64xbf16>
    %c0_20 = arith.constant 0 : index
    %c0_21 = arith.constant 0 : index
    %32 = vector.load %arg9[%c0_20, %c0_21] : memref<64x896xbf16, #tpu.memory_space<vmem>>, vector<64x896xbf16>
    %cst_22 = arith.constant dense<0.000000e+00> : vector<16x896xf32>
    %33 = tpu.matmul %31, %32, %cst_22 {dimension_numbers = #tpu.dot_dimension_numbers<[1], [0], [0], [1], [0, 0, 1, 1], [], []>} : vector<16x64xbf16>, vector<64x896xbf16>, vector<16x896xf32> -> vector<16x896xf32>
    %c0_23 = arith.constant 0 : index
    %c0_24 = arith.constant 0 : index
    %34 = vector.load %arg10[%c0_23, %c0_24] : memref<1x896xf32, #tpu.memory_space<vmem>>, vector<1x896xf32>
    %35 = vector.broadcast %34 : vector<1x896xf32> to vector<16x896xf32>
    %36 = arith.addf %33, %35 : vector<16x896xf32>
    %c0_25 = arith.constant 0 : index
    %c0_26 = arith.constant 0 : index
    %37 = vector.load %arg11[%c0_25, %c0_26] : memref<16x128xf32, #tpu.memory_space<vmem>>, vector<16x128xf32>
    tpu.vector_store %arg11[%c0_25, %c0_26], %14 {strides = array<i32>} : memref<16x128xf32, #tpu.memory_space<vmem>>, vector<16x128xf32>,
    %cst_27 = arith.constant 5.000000e-01 : f32
    %38 = vector.broadcast %cst_27 : f32 to vector<16x896xf32>
    %39 = arith.mulf %38, %36 : vector<16x896xf32>
    %40 = math.tanh %39 : vector<16x896xf32>
    %cst_28 = arith.constant 5.000000e-01 : f32
    %41 = vector.broadcast %cst_28 : f32 to vector<16x896xf32>
    %42 = arith.mulf %41, %40 : vector<16x896xf32>
    %cst_29 = arith.constant 5.000000e-01 : f32
    %43 = vector.broadcast %cst_29 : f32 to vector<16x896xf32>
    %44 = arith.addf %42, %43 : vector<16x896xf32>
    %45 = arith.truncf %44 : vector<16x896xf32> to vector<16x896xbf16>
    %c0_30 = arith.constant 0 : index
    %c0_31 = arith.constant 0 : index
    %46 = vector.load %arg12[%c0_30, %c0_31] : memref<16x896xbf16, #tpu.memory_space<vmem>>, vector<16x896xbf16>
    tpu.vector_store %arg12[%c0_30, %c0_31], %45 {strides = array<i32>} : memref<16x896xbf16, #tpu.memory_space<vmem>>, vector<16x896xbf16>,
    return
  }
  func.func @transform_0(%arg0: i32) -> (i32, i32) {
    %c0_i32 = arith.constant 0 : i32
    %c0_i32_0 = arith.constant 0 : i32
    return %arg0, %c0_i32 : i32, i32
  }
  func.func @transform_1(%arg0: i32) -> (i32, i32) {
    %c0_i32 = arith.constant 0 : i32
    %c0_i32_0 = arith.constant 0 : i32
    return %arg0, %c0_i32 : i32, i32
  }
  func.func @transform_2(%arg0: i32) -> (i32, i32) {
    %c0_i32 = arith.constant 0 : i32
    %c0_i32_0 = arith.constant 0 : i32
    %c0_i32_1 = arith.constant 0 : i32
    return %c0_i32, %c0_i32_0 : i32, i32
  }
  func.func @transform_3(%arg0: i32) -> (i32, i32) {
    %c0_i32 = arith.constant 0 : i32
    %c0_i32_0 = arith.constant 0 : i32
    %c0_i32_1 = arith.constant 0 : i32
    return %c0_i32, %c0_i32_0 : i32, i32
  }
  func.func @transform_4(%arg0: i32) -> (i32, i32) {
    %c0_i32 = arith.constant 0 : i32
    %c0_i32_0 = arith.constant 0 : i32
    %c0_i32_1 = arith.constant 0 : i32
    return %c0_i32, %c0_i32_0 : i32, i32
  }
  func.func @transform_5(%arg0: i32) -> (i32, i32) {
    %c0_i32 = arith.constant 0 : i32
    %c0_i32_0 = arith.constant 0 : i32
    %c0_i32_1 = arith.constant 0 : i32
    return %c0_i32, %c0_i32_0 : i32, i32
  }
  func.func @transform_6(%arg0: i32) -> (i32, i32) {
    %c0_i32 = arith.constant 0 : i32
    %c0_i32_0 = arith.constant 0 : i32
    %c0_i32_1 = arith.constant 0 : i32
    return %c0_i32, %c0_i32_0 : i32, i32
  }
  func.func @transform_7(%arg0: i32) -> (i32, i32) {
    %c0_i32 = arith.constant 0 : i32
    %c0_i32_0 = arith.constant 0 : i32
    %c0_i32_1 = arith.constant 0 : i32
    return %c0_i32, %c0_i32_0 : i32, i32
  }
  func.func @transform_8(%arg0: i32) -> (i32, i32) {
    %c0_i32 = arith.constant 0 : i32
    %c0_i32_0 = arith.constant 0 : i32
    %c0_i32_1 = arith.constant 0 : i32
    return %c0_i32, %c0_i32_0 : i32, i32
  }
  func.func @transform_9(%arg0: i32) -> (i32, i32) {
    %c0_i32 = arith.constant 0 : i32
    %c0_i32_0 = arith.constant 0 : i32
    %c0_i32_1 = arith.constant 0 : i32
    return %c0_i32, %c0_i32_0 : i32, i32
  }
  func.func @transform_10(%arg0: i32) -> (i32, i32) {
    %c0_i32 = arith.constant 0 : i32
    %c0_i32_0 = arith.constant 0 : i32
    return %arg0, %c0_i32 : i32, i32
  }
  func.func @transform_11(%arg0: i32) -> (i32, i32) {
    %c0_i32 = arith.constant 0 : i32
    %c0_i32_0 = arith.constant 0 : i32
    return %arg0, %c0_i32 : i32, i32
  }
}

</mosaic_0001>

<llo_original>
// kernel: tpu_custom_call.1
$region0: #{tpu_custom_call.1}
  #allocation0 [shape = 'u32[]', space=smem, size = 0x4, offset = 0x4, fixed_abs, tag = 'smem constant byte address 0x4 - core index']
  #allocation1 [shape = 'u32[72,128]{1,0:T(1,128)}', space=vmem, size = 0x9000, scoped, tag = 'internal scratch']
  %s0 = inlined_call_operand.vmem [shape: f32[64,784], index: 0, kind: input, shape index: {}]
  %s1 = inlined_call_operand.vmem [shape: f32[64,32], index: 1, kind: input, shape index: {}]
  %s2 = inlined_call_operand.vmem [shape: bf16[784,64], index: 2, kind: input, shape index: {}]
  %s3 = inlined_call_operand.vmem [shape: f32[1,64], index: 3, kind: input, shape index: {}]
  %s4 = inlined_call_operand.vmem [shape: bf16[64,128], index: 4, kind: input, shape index: {}]
  %s5 = inlined_call_operand.hbm [shape: f32[1,128], index: 5, kind: input, shape index: {}]
  %s6 = inlined_call_operand.hbm [shape: bf16[32,64], index: 6, kind: input, shape index: {}]
  %s7 = inlined_call_operand.hbm [shape: f32[1,64], index: 7, kind: input, shape index: {}]
  %s8 = inlined_call_operand.vmem [shape: bf16[64,896], index: 8, kind: input, shape index: {}]
  %s9 = inlined_call_operand.vmem [shape: f32[1,896], index: 9, kind: input, shape index: {}]
  %s10 = inlined_call_operand.hbm [shape: f32[64,128], index: 10, kind: output, shape index: {0}]
  %s11 = inlined_call_operand.hbm [shape: bf16[64,896], index: 11, kind: output, shape index: {1}]
  %12 = xla_tuple %s10, %s11
  %s13 = sld [smem:[#allocation0]]
  $region93: #{tpu_custom_call.1} parent=0
    _
  %s15 = ssub.s32 1, %s13
  %s16 = scalar_select 0, %s15, %s13
  $region1: #{tpu_custom_call.1} parent=0
    #allocation2 [shape = 'u8[512]{0}', space=vmem, size = 0x400, scoped, tag = 'input window, operand 5, single buffered']
    #allocation3 [shape = 's32[2]{0}', space=sflag, size = 0x8, scoped, tag = 'scoped memory for tpu_custom_call.1']
    #allocation4 [shape = 's32[2]{0}', space=sflag, size = 0x8, scoped, tag = 'scoped memory for tpu_custom_call.1']
    #allocation5 [shape = 'u8[8192]{0}', space=vmem, size = 0x2000, scoped, tag = 'input window, operand 6, single buffered']
    #allocation6 [shape = 's32[1]{0}', space=sflag, size = 0x4, scoped, tag = 'scoped memory for tpu_custom_call.1']
    #allocation7 [shape = 'u8[512]{0}', space=vmem, size = 0x400, scoped, tag = 'input window, operand 7, single buffered']
    #allocation8 [shape = 'u8[16384]{0}', space=vmem, size = 0x4000, scoped, tag = 'output window, operand 0']
    #allocation9 [shape = 'u8[57344]{0}', space=vmem, size = 0xe000, scoped, tag = 'output window, operand 1']
    #allocation10 [shape = 's32[2]{0}', space=sflag, size = 0x8, scoped, tag = 'scoped memory for tpu_custom_call.1']
    %17 = vsyncpa [#allocation3], 0
    %18 = vsyncpa [#allocation6], 0
    %19 = vsyncpa [#allocation4], 0
    %s20 = scalar_lea.sflag [#allocation4], 1
    %21 = vsyncpa %s20, 0
    %22 = vsyncpa [#allocation10], 0
    %s23 = scalar_lea.sflag [#allocation10], 1
    %24 = vsyncpa %s23, 0
    loop: start=0, step=1, limit=6
    $region2: #{tpu_custom_call.1} parent=1 // loop_pre_header
      _
    $region3: #{tpu_custom_call.1} parent=1 // loop_header
      %s26 = sphi 0, %s30
      %p27 = scmp.ge.s32.totalorder %s26, 6
      %s36 = sphi 0, %s38
      %s39 = sphi 0, %s36
      %s40 = sphi 0, %s39
      %s56 = sphi 0, %s40
      %s62 = sphi 0, %s64
      %s65 = sphi 0, %s62
      %s66 = sphi 0, %s65
      %s82 = sphi 0, %s66
      %s86 = sphi 0, %s86
      %s88 = sphi 0, %s86
      %s89 = sphi 0, %s88
      %s103 = sphi 0, %s89
      %s107 = sphi 0, %s107
      %s109 = sphi 0, %s107
      %s110 = sphi 0, %s109
      %s124 = sphi 0, %s110
      %s128 = sphi 0, %s128
      %s130 = sphi 0, %s128
      %s131 = sphi 0, %s130
      %s145 = sphi 0, %s131
      %s149 = sphi 0, %s149
      %s151 = sphi 0, %s149
      %s152 = sphi 0, %s151
      %s166 = sphi 0, %s152
      %s170 = sphi 0, %s170
      %s172 = sphi 0, %s170
      %s173 = sphi 0, %s172
      %s187 = sphi 0, %s173
      %s191 = sphi 0, %s191
      %s193 = sphi 0, %s191
      %s194 = sphi 0, %s193
      %s208 = sphi 0, %s194
      %s212 = sphi 0, %s212
      %s214 = sphi 0, %s212
      %s215 = sphi 0, %s214
      %s229 = sphi 0, %s215
      %s233 = sphi 0, %s233
      %s235 = sphi 0, %s233
      %s236 = sphi 0, %s235
      %s250 = sphi 0, %s236
      %s256 = sphi 0, %s258
      %s259 = sphi 0, %s256
      %s260 = sphi 0, %s259
      %s276 = sphi 0, %s260
      %s282 = sphi 0, %s284
      %s285 = sphi 0, %s282
      %s286 = sphi 0, %s285
      %s302 = sphi 0, %s286
    $region4: #{tpu_custom_call.1} parent=1 // loop_header_branch
      %29 = sbr.rel (%p27) target = $region8
    $region5: #{tpu_custom_call.1} parent=1 // loop_body
      %s31 = ssub.s32 %s26, 1
      %s32 = ssub.s32 %s26, 2
      %s33 = sadd.s32 %s26, 1
      %s34 = ssub.s32 %s26, %s33
      %p35 = scmp.eq.s32.totalorder %s34, 0
      %s37 = sadd.s32 %s36, 1
      %s38 = scalar_select %p35, %s36, %s37
      %p41 = pneg %p35
      %p42 = scmp.eq.s32.totalorder %s26, 3
      %p43 = por %p41, %p42
      %p44 = scmp.ne.s32.totalorder %s36, %s39
      %p45 = scmp.eq.s32.totalorder %s26, 0
      %p46 = por %p44, %p45
      %p47 = scmp.ne.s32.totalorder %s36, %s39
      %p48 = scmp.eq.s32.totalorder %s31, 3
      %p49 = por %p47, %p48
      %p50 = scmp.ne.s32.totalorder %s39, %s40
      %p51 = scmp.eq.s32.totalorder %s31, 0
      %p52 = por %p50, %p51
      %p53 = scmp.ne.s32.totalorder %s39, %s40
      %p54 = scmp.eq.s32.totalorder %s32, 3
      %p55 = por %p53, %p54
      %p57 = scmp.ne.s32.totalorder %s40, %s56
      %p58 = scmp.eq.s32.totalorder %s32, 0
      %p59 = por %p57, %p58
      %s60 = ssub.s32 %s26, %s33
      %p61 = scmp.eq.s32.totalorder %s60, 0
      %s63 = sadd.s32 %s62, 1
      %s64 = scalar_select %p61, %s62, %s63
      %p67 = pneg %p61
      %p68 = scmp.eq.s32.totalorder %s26, 3
      %p69 = por %p67, %p68
      %p70 = scmp.ne.s32.totalorder %s62, %s65
      %p71 = scmp.eq.s32.totalorder %s26, 0
      %p72 = por %p70, %p71
      %p73 = scmp.ne.s32.totalorder %s62, %s65
      %p74 = scmp.eq.s32.totalorder %s31, 3
      %p75 = por %p73, %p74
      %p76 = scmp.ne.s32.totalorder %s65, %s66
      %p77 = scmp.eq.s32.totalorder %s31, 0
      %p78 = por %p76, %p77
      %p79 = scmp.ne.s32.totalorder %s65, %s66
      %p80 = scmp.eq.s32.totalorder %s32, 3
      %p81 = por %p79, %p80
      %p83 = scmp.ne.s32.totalorder %s66, %s82
      %p84 = scmp.eq.s32.totalorder %s32, 0
      %p85 = por %p83, %p84
      %s87 = sadd.s32 %s86, 1
      %p90 = scmp.eq.s32.totalorder %s26, 3
      %p91 = scmp.ne.s32.totalorder %s86, %s88
      %p92 = scmp.eq.s32.totalorder %s26, 0
      %p93 = por %p91, %p92
      %p94 = scmp.ne.s32.totalorder %s86, %s88
      %p95 = scmp.eq.s32.totalorder %s31, 3
      %p96 = por %p94, %p95
      %p97 = scmp.ne.s32.totalorder %s88, %s89
      %p98 = scmp.eq.s32.totalorder %s31, 0
      %p99 = por %p97, %p98
      %p100 = scmp.ne.s32.totalorder %s88, %s89
      %p101 = scmp.eq.s32.totalorder %s32, 3
      %p102 = por %p100, %p101
      %p104 = scmp.ne.s32.totalorder %s89, %s103
      %p105 = scmp.eq.s32.totalorder %s32, 0
      %p106 = por %p104, %p105
      %s108 = sadd.s32 %s107, 1
      %p111 = scmp.eq.s32.totalorder %s26, 3
      %p112 = scmp.ne.s32.totalorder %s107, %s109
      %p113 = scmp.eq.s32.totalorder %s26, 0
      %p114 = por %p112, %p113
      %p115 = scmp.ne.s32.totalorder %s107, %s109
      %p116 = scmp.eq.s32.totalorder %s31, 3
      %p117 = por %p115, %p116
      %p118 = scmp.ne.s32.totalorder %s109, %s110
      %p119 = scmp.eq.s32.totalorder %s31, 0
      %p120 = por %p118, %p119
      %p121 = scmp.ne.s32.totalorder %s109, %s110
      %p122 = scmp.eq.s32.totalorder %s32, 3
      %p123 = por %p121, %p122
      %p125 = scmp.ne.s32.totalorder %s110, %s124
      %p126 = scmp.eq.s32.totalorder %s32, 0
      %p127 = por %p125, %p126
      %s129 = sadd.s32 %s128, 1
      %p132 = scmp.eq.s32.totalorder %s26, 3
      %p133 = scmp.ne.s32.totalorder %s128, %s130
      %p134 = scmp.eq.s32.totalorder %s26, 0
      %p135 = por %p133, %p134
      %p136 = scmp.ne.s32.totalorder %s128, %s130
      %p137 = scmp.eq.s32.totalorder %s31, 3
      %p138 = por %p136, %p137
      %p139 = scmp.ne.s32.totalorder %s130, %s131
      %p140 = scmp.eq.s32.totalorder %s31, 0
      %p141 = por %p139, %p140
      %p142 = scmp.ne.s32.totalorder %s130, %s131
      %p143 = scmp.eq.s32.totalorder %s32, 3
      %p144 = por %p142, %p143
      %p146 = scmp.ne.s32.totalorder %s131, %s145
      %p147 = scmp.eq.s32.totalorder %s32, 0
      %p148 = por %p146, %p147
      %s150 = sadd.s32 %s149, 1
      %p153 = scmp.eq.s32.totalorder %s26, 3
      %p154 = scmp.ne.s32.totalorder %s149, %s151
      %p155 = scmp.eq.s32.totalorder %s26, 0
      %p156 = por %p154, %p155
      %p157 = scmp.ne.s32.totalorder %s149, %s151
      %p158 = scmp.eq.s32.totalorder %s31, 3
      %p159 = por %p157, %p158
      %p160 = scmp.ne.s32.totalorder %s151, %s152
      %p161 = scmp.eq.s32.totalorder %s31, 0
      %p162 = por %p160, %p161
      %p163 = scmp.ne.s32.totalorder %s151, %s152
      %p164 = scmp.eq.s32.totalorder %s32, 3
      %p165 = por %p163, %p164
      %p167 = scmp.ne.s32.totalorder %s152, %s166
      %p168 = scmp.eq.s32.totalorder %s32, 0
      %p169 = por %p167, %p168
      %s171 = sadd.s32 %s170, 1
      %p174 = scmp.eq.s32.totalorder %s26, 3
      %p175 = scmp.ne.s32.totalorder %s170, %s172
      %p176 = scmp.eq.s32.totalorder %s26, 0
      %p177 = por %p175, %p176
      %p178 = scmp.ne.s32.totalorder %s170, %s172
      %p179 = scmp.eq.s32.totalorder %s31, 3
      %p180 = por %p178, %p179
      %p181 = scmp.ne.s32.totalorder %s172, %s173
      %p182 = scmp.eq.s32.totalorder %s31, 0
      %p183 = por %p181, %p182
      %p184 = scmp.ne.s32.totalorder %s172, %s173
      %p185 = scmp.eq.s32.totalorder %s32, 3
      %p186 = por %p184, %p185
      %p188 = scmp.ne.s32.totalorder %s173, %s187
      %p189 = scmp.eq.s32.totalorder %s32, 0
      %p190 = por %p188, %p189
      %s192 = sadd.s32 %s191, 1
      %p195 = scmp.eq.s32.totalorder %s26, 3
      %p196 = scmp.ne.s32.totalorder %s191, %s193
      %p197 = scmp.eq.s32.totalorder %s26, 0
      %p198 = por %p196, %p197
      %p199 = scmp.ne.s32.totalorder %s191, %s193
      %p200 = scmp.eq.s32.totalorder %s31, 3
      %p201 = por %p199, %p200
      %p202 = scmp.ne.s32.totalorder %s193, %s194
      %p203 = scmp.eq.s32.totalorder %s31, 0
      %p204 = por %p202, %p203
      %p205 = scmp.ne.s32.totalorder %s193, %s194
      %p206 = scmp.eq.s32.totalorder %s32, 3
      %p207 = por %p205, %p206
      %p209 = scmp.ne.s32.totalorder %s194, %s208
      %p210 = scmp.eq.s32.totalorder %s32, 0
      %p211 = por %p209, %p210
      %s213 = sadd.s32 %s212, 1
      %p216 = scmp.eq.s32.totalorder %s26, 3
      %p217 = scmp.ne.s32.totalorder %s212, %s214
      %p218 = scmp.eq.s32.totalorder %s26, 0
      %p219 = por %p217, %p218
      %p220 = scmp.ne.s32.totalorder %s212, %s214
      %p221 = scmp.eq.s32.totalorder %s31, 3
      %p222 = por %p220, %p221
      %p223 = scmp.ne.s32.totalorder %s214, %s215
      %p224 = scmp.eq.s32.totalorder %s31, 0
      %p225 = por %p223, %p224
      %p226 = scmp.ne.s32.totalorder %s214, %s215
      %p227 = scmp.eq.s32.totalorder %s32, 3
      %p228 = por %p226, %p227
      %p230 = scmp.ne.s32.totalorder %s215, %s229
      %p231 = scmp.eq.s32.totalorder %s32, 0
      %p232 = por %p230, %p231
      %s234 = sadd.s32 %s233, 1
      %p237 = scmp.eq.s32.totalorder %s26, 3
      %p238 = scmp.ne.s32.totalorder %s233, %s235
      %p239 = scmp.eq.s32.totalorder %s26, 0
      %p240 = por %p238, %p239
      %p241 = scmp.ne.s32.totalorder %s233, %s235
      %p242 = scmp.eq.s32.totalorder %s31, 3
      %p243 = por %p241, %p242
      %p244 = scmp.ne.s32.totalorder %s235, %s236
      %p245 = scmp.eq.s32.totalorder %s31, 0
      %p246 = por %p244, %p245
      %p247 = scmp.ne.s32.totalorder %s235, %s236
      %p248 = scmp.eq.s32.totalorder %s32, 3
      %p249 = por %p247, %p248
      %p251 = scmp.ne.s32.totalorder %s236, %s250
      %p252 = scmp.eq.s32.totalorder %s32, 0
      %p253 = por %p251, %p252
      %s254 = ssub.s32 %s26, %s33
      %p255 = scmp.eq.s32.totalorder %s254, 0
      %s257 = sadd.s32 %s256, 1
      %s258 = scalar_select %p255, %s256, %s257
      %p261 = pneg %p255
      %p262 = scmp.eq.s32.totalorder %s26, 3
      %p263 = por %p261, %p262
      %p264 = scmp.ne.s32.totalorder %s256, %s259
      %p265 = scmp.eq.s32.totalorder %s26, 0
      %p266 = por %p264, %p265
      %p267 = scmp.ne.s32.totalorder %s256, %s259
      %p268 = scmp.eq.s32.totalorder %s31, 3
      %p269 = por %p267, %p268
      %p270 = scmp.ne.s32.totalorder %s259, %s260
      %p271 = scmp.eq.s32.totalorder %s31, 0
      %p272 = por %p270, %p271
      %p273 = scmp.ne.s32.totalorder %s259, %s260
      %p274 = scmp.eq.s32.totalorder %s32, 3
      %p275 = por %p273, %p274
      %p277 = scmp.ne.s32.totalorder %s260, %s276
      %p278 = scmp.eq.s32.totalorder %s32, 0
      %p279 = por %p277, %p278
      %s280 = ssub.s32 %s26, %s33
      %p281 = scmp.eq.s32.totalorder %s280, 0
      %s283 = sadd.s32 %s282, 1
      %s284 = scalar_select %p281, %s282, %s283
      %p287 = pneg %p281
      %p288 = scmp.eq.s32.totalorder %s26, 3
      %p289 = por %p287, %p288
      %p290 = scmp.ne.s32.totalorder %s282, %s285
      %p291 = scmp.eq.s32.totalorder %s26, 0
      %p292 = por %p290, %p291
      %p293 = scmp.ne.s32.totalorder %s282, %s285
      %p294 = scmp.eq.s32.totalorder %s31, 3
      %p295 = por %p293, %p294
      %p296 = scmp.ne.s32.totalorder %s285, %s286
      %p297 = scmp.eq.s32.totalorder %s31, 0
      %p298 = por %p296, %p297
      %p299 = scmp.ne.s32.totalorder %s285, %s286
      %p300 = scmp.eq.s32.totalorder %s32, 3
      %p301 = por %p299, %p300
      %p303 = scmp.ne.s32.totalorder %s286, %s302
      %p304 = scmp.eq.s32.totalorder %s32, 0
      %p305 = por %p303, %p304
      %p306 = scmp.le.s32.totalorder 1, %s26
      %p307 = scmp.lt.s32.totalorder %s26, 5
      %p308 = pnand %p306, %p307
      %p309 = pneg %p308
      // Predicated region
      $region9: #{tpu_custom_call.1} parent=5 // pred_check
        _
      $region10: #{tpu_custom_call.1} parent=5 // pred_check_branch
        %311 = sbr.rel (%p308) target = $region12
      $region11: #{tpu_custom_call.1} parent=5 // pred_region
        %s312 = ssub.s32 %s26, 1
        // Predicated region
        $region13: #{tpu_custom_call.1} parent=11 // pred_check
          %p313 = pneg %p99
        $region14: #{tpu_custom_call.1} parent=11 // pred_check_branch
          %315 = sbr.rel (%p313) target = $region16
        $region15: #{tpu_custom_call.1} parent=11 // pred_region
          _
        $region16: #{tpu_custom_call.1} parent=11 // pred_fallthru
          _
        // Predicated region
        $region17: #{tpu_custom_call.1} parent=11 // pred_check
          %p316 = pneg %p120
        $region18: #{tpu_custom_call.1} parent=11 // pred_check_branch
          %318 = sbr.rel (%p316) target = $region20
        $region19: #{tpu_custom_call.1} parent=11 // pred_region
          _
        $region20: #{tpu_custom_call.1} parent=11 // pred_fallthru
          _
        // Predicated region
        $region21: #{tpu_custom_call.1} parent=11 // pred_check
          %p319 = pneg %p141
        $region22: #{tpu_custom_call.1} parent=11 // pred_check_branch
          %321 = sbr.rel (%p319) target = $region24
        $region23: #{tpu_custom_call.1} parent=11 // pred_region
          _
        $region24: #{tpu_custom_call.1} parent=11 // pred_fallthru
          _
        // Predicated region
        $region25: #{tpu_custom_call.1} parent=11 // pred_check
          %p322 = pneg %p162
        $region26: #{tpu_custom_call.1} parent=11 // pred_check_branch
          %324 = sbr.rel (%p322) target = $region28
        $region27: #{tpu_custom_call.1} parent=11 // pred_region
          %326 = vsyncadd [#allocation3], 0
          %s328 = sshll.u32 %s5, 4
          %s329 = int_to_ptr.hbm [resolvable:$true] %s328
          %s330 = sshll.u32 [#allocation2], 4
          %s331 = int_to_ptr.vmem [resolvable:$true] %s330
          %333 = dma.hbm_to_vmem [thread:$0]  %s329, 16, %s331, [#allocation3]
        $region28: #{tpu_custom_call.1} parent=11 // pred_fallthru
          _
        // Predicated region
        $region29: #{tpu_custom_call.1} parent=11 // pred_check
          %p334 = pneg %p183
        $region30: #{tpu_custom_call.1} parent=11 // pred_check_branch
          %336 = sbr.rel (%p334) target = $region32
        $region31: #{tpu_custom_call.1} parent=11 // pred_region
          %338 = vsyncadd [#allocation6], 0
          %s339 = sshll.u32 %s6, 4
          %s340 = int_to_ptr.hbm [resolvable:$true] %s339
          %s341 = sshll.u32 [#allocation5], 4
          %s342 = int_to_ptr.vmem [resolvable:$true] %s341
          %347 = dma.hbm_to_vmem [thread:$0]  %s340, 256, %s342, [#allocation6], 64, 64, 4
        $region32: #{tpu_custom_call.1} parent=11 // pred_fallthru
          _
        // Predicated region
        $region33: #{tpu_custom_call.1} parent=11 // pred_check
          %p348 = pneg %p204
        $region34: #{tpu_custom_call.1} parent=11 // pred_check_branch
          %350 = sbr.rel (%p348) target = $region36
        $region35: #{tpu_custom_call.1} parent=11 // pred_region
          %352 = vsyncadd [#allocation6], 0
          %s354 = sshll.u32 %s7, 4
          %s355 = int_to_ptr.hbm [resolvable:$true] %s354
          %s356 = sshll.u32 [#allocation7], 4
          %s357 = int_to_ptr.vmem [resolvable:$true] %s356
          %359 = dma.hbm_to_vmem [thread:$0]  %s355, 16, %s357, [#allocation6]
        $region36: #{tpu_custom_call.1} parent=11 // pred_fallthru
          _
        // Predicated region
        $region37: #{tpu_custom_call.1} parent=11 // pred_check
          %p360 = pneg %p225
        $region38: #{tpu_custom_call.1} parent=11 // pred_check_branch
          %362 = sbr.rel (%p360) target = $region40
        $region39: #{tpu_custom_call.1} parent=11 // pred_region
          _
        $region40: #{tpu_custom_call.1} parent=11 // pred_fallthru
          _
        // Predicated region
        $region41: #{tpu_custom_call.1} parent=11 // pred_check
          %p363 = pneg %p246
        $region42: #{tpu_custom_call.1} parent=11 // pred_check_branch
          %365 = sbr.rel (%p363) target = $region44
        $region43: #{tpu_custom_call.1} parent=11 // pred_region
          _
        $region44: #{tpu_custom_call.1} parent=11 // pred_fallthru
          _
      $region12: #{tpu_custom_call.1} parent=5 // pred_fallthru
        _
      %p366 = scmp.lt.s32.totalorder %s26, 4
      // Predicated region
      $region45: #{tpu_custom_call.1} parent=5 // pred_check
        %p367 = pneg %p366
      $region46: #{tpu_custom_call.1} parent=5 // pred_check_branch
        %369 = sbr.rel (%p367) target = $region48
      $region47: #{tpu_custom_call.1} parent=5 // pred_region
        // Predicated region
        $region49: #{tpu_custom_call.1} parent=47 // pred_check
          %p370 = pneg %p46
        $region50: #{tpu_custom_call.1} parent=47 // pred_check_branch
          %372 = sbr.rel (%p370) target = $region52
        $region51: #{tpu_custom_call.1} parent=47 // pred_region
          %s373 = smul.u32 2, %s26
          %p374 = scmp.lt.s32.totalorder %s373, 7
          %s375 = scalar_select %p374, %s373, 7
          %s376 = smul.addr %s375, 7
          %s377 = smul.addr %s376, 8
          %s378 = scalar_lea.vmem %s0, %s377
          %s379 = smul.u32 2, %s26
        $region52: #{tpu_custom_call.1} parent=47 // pred_fallthru
          _
        // Predicated region
        $region53: #{tpu_custom_call.1} parent=47 // pred_check
          %p380 = pneg %p72
        $region54: #{tpu_custom_call.1} parent=47 // pred_check_branch
          %382 = sbr.rel (%p380) target = $region56
        $region55: #{tpu_custom_call.1} parent=47 // pred_region
          %s383 = smul.u32 2, %s26
          %p384 = scmp.lt.s32.totalorder %s383, 7
          %s385 = scalar_select %p384, %s383, 7
          %s386 = smul.addr %s385, 8
          %s387 = scalar_lea.vmem %s1, %s386
          %s388 = smul.u32 2, %s26
        $region56: #{tpu_custom_call.1} parent=47 // pred_fallthru
          _
      $region48: #{tpu_custom_call.1} parent=5 // pred_fallthru
        _
      %p389 = scmp.le.s32.totalorder 1, %s26
      %p390 = scmp.lt.s32.totalorder %s26, 5
      %p391 = pnand %p389, %p390
      %p392 = pneg %p391
      // Predicated region
      $region57: #{tpu_custom_call.1} parent=5 // pred_check
        _
      $region58: #{tpu_custom_call.1} parent=5 // pred_check_branch
        %394 = sbr.rel (%p391) target = $region60
      $region59: #{tpu_custom_call.1} parent=5 // pred_region
        %s395 = ssub.s32 %s26, 1
        // Predicated region
        $region61: #{tpu_custom_call.1} parent=59 // pred_check
          %p396 = pneg %p162
        $region62: #{tpu_custom_call.1} parent=59 // pred_check_branch
          %398 = sbr.rel (%p396) target = $region64
        $region63: #{tpu_custom_call.1} parent=59 // pred_region
          %400 = dma.done [#allocation3], 16
        $region64: #{tpu_custom_call.1} parent=59 // pred_fallthru
          _
        // Predicated region
        $region65: #{tpu_custom_call.1} parent=59 // pred_check
          %p401 = pneg %p183
        $region66: #{tpu_custom_call.1} parent=59 // pred_check_branch
          %403 = sbr.rel (%p401) target = $region68
        $region67: #{tpu_custom_call.1} parent=59 // pred_region
          %405 = dma.done [#allocation6], 256
        $region68: #{tpu_custom_call.1} parent=59 // pred_fallthru
          _
        // Predicated region
        $region69: #{tpu_custom_call.1} parent=59 // pred_check
          %p406 = pneg %p204
        $region70: #{tpu_custom_call.1} parent=59 // pred_check_branch
          %408 = sbr.rel (%p406) target = $region72
        $region71: #{tpu_custom_call.1} parent=59 // pred_region
          %410 = dma.done [#allocation6], 16
        $region72: #{tpu_custom_call.1} parent=59 // pred_fallthru
          _
        %s411 = smul.u32 2, %s31
        %p412 = scmp.lt.s32.totalorder %s411, 7
        %s413 = scalar_select %p412, %s411, 7
        %s414 = smul.addr %s413, 7
        %s415 = smul.addr %s414, 8
        %s416 = scalar_lea.vmem %s0, %s415
        %p417 = pneg %p52
        %p418 = pneg %p49
        %s419 = smul.u32 2, %s31
        %p420 = scmp.lt.s32.totalorder %s419, 7
        %s421 = scalar_select %p420, %s419, 7
        %s422 = smul.addr %s421, 8
        %s423 = scalar_lea.vmem %s1, %s422
        %p424 = pneg %p78
        %p425 = pneg %p75
        %p426 = pneg %p99
        %p427 = pneg %p96
        %p428 = pneg %p120
        %p429 = pneg %p117
        %p430 = pneg %p141
        %p431 = pneg %p138
        %p432 = pneg %p162
        %p433 = pneg %p159
        %p434 = pneg %p183
        %p435 = pneg %p180
        %p436 = pneg %p204
        %p437 = pneg %p201
        %p438 = pneg %p225
        %p439 = pneg %p222
        %p440 = pneg %p246
        %p441 = pneg %p243
        %p442 = pneg %p272
        %p443 = pneg %p269
        %s444 = sand.u32 %s259, 1
        %s445 = scalar_lea.sflag [#allocation4], %s444
        %s446 = sand.u32 %s259, 1
        %s447 = smul.addr %s446, 16
        %s448 = scalar_lea.vmem [#allocation8], %s447
        %p449 = pneg %p298
        %p450 = pneg %p295
        %s451 = sand.u32 %s285, 1
        %s452 = scalar_lea.sflag [#allocation10], %s451
        %s453 = sand.u32 %s285, 1
        %s454 = smul.addr %s453, 56
        %s455 = scalar_lea.vmem [#allocation9], %s454
        %s456 = smul.u32 2, %s31
        %p457 = scmp.lt.s32.totalorder %s456, 7
        %s458 = scalar_select %p457, %s456, 7
        %s459 = smul.addr %s458, 7
        %s460 = smul.addr %s459, 8
        %s461 = scalar_lea.vmem %s0, %s460
        %s462 = smul.u32 2, %s31
        %s463 = smul.u32 2, %s31
        %p464 = scmp.lt.s32.totalorder %s463, 7
        %s465 = scalar_select %p464, %s463, 7
        %s466 = smul.addr %s465, 8
        %s467 = scalar_lea.vmem %s1, %s466
        %s468 = smul.u32 2, %s31
        %s469 = smul.u32 2, %s31
        %s470 = smul.u32 2, %s31
        %v472 = vld [vmem:[%s461] sm:$0xff]
        %v473 = vld [vmem:[%s461 + $0x8] sm:$0xff]
        %v474 = vld [vmem:[%s461 + $0x10] sm:$0xff]
        %v475 = vld [vmem:[%s461 + $0x18] sm:$0xff]
        %v476 = vld [vmem:[%s461 + $0x20] sm:$0xff]
        %v477 = vld [vmem:[%s461 + $0x28] sm:$0xff]
        %v478 = vld [vmem:[%s461 + $0x30] sm:$0xff]
        %v479 = vld [vmem:[%s461 + $0x38] sm:$0xff]
        %v480 = vld [vmem:[%s461 + $0x40] sm:$0xff]
        %v481 = vld [vmem:[%s461 + $0x48] sm:$0xff]
        %v482 = vld [vmem:[%s461 + $0x50] sm:$0xff]
        %v483 = vld [vmem:[%s461 + $0x58] sm:$0xff]
        %v484 = vld [vmem:[%s461 + $0x60] sm:$0xff]
        %v485 = vld [vmem:[%s461 + $0x68] sm:$0xff]
        %v486 = vpack.c.bf16 %v479, %v472
        %v487 = vpack.c.bf16 %v480, %v473
        %v488 = vpack.c.bf16 %v481, %v474
        %v489 = vpack.c.bf16 %v482, %v475
        %v490 = vpack.c.bf16 %v483, %v476
        %v491 = vpack.c.bf16 %v484, %v477
        %v492 = vpack.c.bf16 %v485, %v478
        %v493 = vld [vmem:[%s2] sm:$0xf]
        %v494 = vld [vmem:[%s2 + $0x4] sm:$0xf]
        %v495 = vld [vmem:[%s2 + $0x8] sm:$0xf]
        %v496 = vld [vmem:[%s2 + $0xc] sm:$0xf]
        %v497 = vld [vmem:[%s2 + $0x10] sm:$0xf]
        %v498 = vld [vmem:[%s2 + $0x14] sm:$0xf]
        %v499 = vld [vmem:[%s2 + $0x18] sm:$0xf]
        %v500 = vld [vmem:[%s2 + $0x1c] sm:$0xf]
        %v501 = vld [vmem:[%s2 + $0x20] sm:$0xf]
        %v502 = vld [vmem:[%s2 + $0x24] sm:$0xf]
        %v503 = vld [vmem:[%s2 + $0x28] sm:$0xf]
        %v504 = vld [vmem:[%s2 + $0x2c] sm:$0xf]
        %v505 = vld [vmem:[%s2 + $0x30] sm:$0xf]
        %v506 = vld [vmem:[%s2 + $0x34] sm:$0xf]
        %v507 = vld [vmem:[%s2 + $0x38] sm:$0xf]
        %v508 = vld [vmem:[%s2 + $0x3c] sm:$0xf]
        %v509 = vld [vmem:[%s2 + $0x40] sm:$0xf]
        %v510 = vld [vmem:[%s2 + $0x44] sm:$0xf]
        %v511 = vld [vmem:[%s2 + $0x48] sm:$0xf]
        %v512 = vld [vmem:[%s2 + $0x4c] sm:$0xf]
        %v513 = vld [vmem:[%s2 + $0x50] sm:$0xf]
        %v514 = vld [vmem:[%s2 + $0x54] sm:$0xf]
        %v515 = vld [vmem:[%s2 + $0x58] sm:$0xf]
        %v516 = vld [vmem:[%s2 + $0x5c] sm:$0xf]
        %v517 = vld [vmem:[%s2 + $0x60] sm:$0xf]
        %v518 = vld [vmem:[%s2 + $0x64] sm:$0xf]
        %v519 = vld [vmem:[%s2 + $0x68] sm:$0xf]
        %v520 = vld [vmem:[%s2 + $0x6c] sm:$0xf]
        %v521 = vld [vmem:[%s2 + $0x70] sm:$0xf]
        %v522 = vld [vmem:[%s2 + $0x74] sm:$0xf]
        %v523 = vld [vmem:[%s2 + $0x78] sm:$0xf]
        %v524 = vld [vmem:[%s2 + $0x7c] sm:$0xf]
        %v525 = vld [vmem:[%s2 + $0x80] sm:$0xf]
        %v526 = vld [vmem:[%s2 + $0x84] sm:$0xf]
        %v527 = vld [vmem:[%s2 + $0x88] sm:$0xf]
        %v528 = vld [vmem:[%s2 + $0x8c] sm:$0xf]
        %v529 = vld [vmem:[%s2 + $0x90] sm:$0xf]
        %v530 = vld [vmem:[%s2 + $0x94] sm:$0xf]
        %v531 = vld [vmem:[%s2 + $0x98] sm:$0xf]
        %v532 = vld [vmem:[%s2 + $0x9c] sm:$0xf]
        %v533 = vld [vmem:[%s2 + $0xa0] sm:$0xf]
        %v534 = vld [vmem:[%s2 + $0xa4] sm:$0xf]
        %v535 = vld [vmem:[%s2 + $0xa8] sm:$0xf]
        %v536 = vld [vmem:[%s2 + $0xac] sm:$0xf]
        %v537 = vld [vmem:[%s2 + $0xb0] sm:$0xf]
        %v538 = vld [vmem:[%s2 + $0xb4] sm:$0xf]
        %v539 = vld [vmem:[%s2 + $0xb8] sm:$0xf]
        %v540 = vld [vmem:[%s2 + $0xbc] sm:$0xf]
        %v541 = vld [vmem:[%s2 + $0xc0] sm:$0xf]
        %v542 = vld [vmem:[%s2 + $0xc4] sm:$0xf]
        %v543 = vld [vmem:[%s2 + $0xc8] sm:$0xf]
        %v544 = vld [vmem:[%s2 + $0xcc] sm:$0xf]
        %v545 = vld [vmem:[%s2 + $0xd0] sm:$0xf]
        %v546 = vld [vmem:[%s2 + $0xd4] sm:$0xf]
        %v547 = vld [vmem:[%s2 + $0xd8] sm:$0xf]
        %v548 = vld [vmem:[%s2 + $0xdc] sm:$0xf]
        %v549 = vld [vmem:[%s2 + $0xe0] sm:$0xf]
        %v550 = vld [vmem:[%s2 + $0xe4] sm:$0xf]
        %v551 = vld [vmem:[%s2 + $0xe8] sm:$0xf]
        %v552 = vld [vmem:[%s2 + $0xec] sm:$0xf]
        %v553 = vld [vmem:[%s2 + $0xf0] sm:$0xf]
        %v554 = vld [vmem:[%s2 + $0xf4] sm:$0xf]
        %v555 = vld [vmem:[%s2 + $0xf8] sm:$0xf]
        %v556 = vld [vmem:[%s2 + $0xfc] sm:$0xf]
        %v557 = vld [vmem:[%s2 + $0x100] sm:$0xf]
        %v558 = vld [vmem:[%s2 + $0x104] sm:$0xf]
        %v559 = vld [vmem:[%s2 + $0x108] sm:$0xf]
        %v560 = vld [vmem:[%s2 + $0x10c] sm:$0xf]
        %v561 = vld [vmem:[%s2 + $0x110] sm:$0xf]
        %v562 = vld [vmem:[%s2 + $0x114] sm:$0xf]
        %v563 = vld [vmem:[%s2 + $0x118] sm:$0xf]
        %v564 = vld [vmem:[%s2 + $0x11c] sm:$0xf]
        %v565 = vld [vmem:[%s2 + $0x120] sm:$0xf]
        %v566 = vld [vmem:[%s2 + $0x124] sm:$0xf]
        %v567 = vld [vmem:[%s2 + $0x128] sm:$0xf]
        %v568 = vld [vmem:[%s2 + $0x12c] sm:$0xf]
        %v569 = vld [vmem:[%s2 + $0x130] sm:$0xf]
        %v570 = vld [vmem:[%s2 + $0x134] sm:$0xf]
        %v571 = vld [vmem:[%s2 + $0x138] sm:$0xf]
        %v572 = vld [vmem:[%s2 + $0x13c] sm:$0xf]
        %v573 = vld [vmem:[%s2 + $0x140] sm:$0xf]
        %v574 = vld [vmem:[%s2 + $0x144] sm:$0xf]
        %v575 = vld [vmem:[%s2 + $0x148] sm:$0xf]
        %v576 = vld [vmem:[%s2 + $0x14c] sm:$0xf]
        %v577 = vld [vmem:[%s2 + $0x150] sm:$0xf]
        %v578 = vld [vmem:[%s2 + $0x154] sm:$0xf]
        %v579 = vld [vmem:[%s2 + $0x158] sm:$0xf]
        %v580 = vld [vmem:[%s2 + $0x15c] sm:$0xf]
        %v581 = vld [vmem:[%s2 + $0x160] sm:$0xf]
        %v582 = vld [vmem:[%s2 + $0x164] sm:$0xf]
        %v583 = vld [vmem:[%s2 + $0x168] sm:$0xf]
        %v584 = vld [vmem:[%s2 + $0x16c] sm:$0xf]
        %v585 = vld [vmem:[%s2 + $0x170] sm:$0xf]
        %v586 = vld [vmem:[%s2 + $0x174] sm:$0xf]
        %v587 = vld [vmem:[%s2 + $0x178] sm:$0xf]
        %v588 = vld [vmem:[%s2 + $0x17c] sm:$0xf]
        %v589 = vld [vmem:[%s2 + $0x180] sm:$0xf]
        %v590 = vld [vmem:[%s2 + $0x184] sm:$0xf]
        %v591 = vld [vmem:[%s3] sm:$0x1]
        %v593 = vperm.slane %v591, 0
        %v693 = vunpack.c.l.b16 %v493
        %v694 = vunpack.c.l.b16 %v494
        %v695 = vunpack.c.l.b16 %v495
        %v696 = vunpack.c.l.b16 %v496
        %v697 = vunpack.c.l.b16 %v497
        %v698 = vunpack.c.l.b16 %v498
        %v699 = vunpack.c.l.b16 %v499
        %v700 = vunpack.c.l.b16 %v500
        %v701 = vunpack.c.l.b16 %v501
        %v702 = vunpack.c.l.b16 %v502
        %v703 = vunpack.c.l.b16 %v503
        %v704 = vunpack.c.l.b16 %v504
        %v705 = vunpack.c.l.b16 %v505
        %v706 = vunpack.c.l.b16 %v506
        %v707 = vunpack.c.l.b16 %v507
        %v708 = vunpack.c.l.b16 %v508
        %v709 = vunpack.c.l.b16 %v509
        %v710 = vunpack.c.l.b16 %v510
        %v711 = vunpack.c.l.b16 %v511
        %v712 = vunpack.c.l.b16 %v512
        %v713 = vunpack.c.l.b16 %v513
        %v714 = vunpack.c.l.b16 %v514
        %v715 = vunpack.c.l.b16 %v515
        %v716 = vunpack.c.l.b16 %v516
        %v717 = vunpack.c.l.b16 %v517
        %v718 = vunpack.c.l.b16 %v518
        %v719 = vunpack.c.l.b16 %v519
        %v720 = vunpack.c.l.b16 %v520
        %v721 = vunpack.c.l.b16 %v521
        %v722 = vunpack.c.l.b16 %v522
        %v723 = vunpack.c.l.b16 %v523
        %v724 = vunpack.c.l.b16 %v524
        %v725 = vunpack.c.l.b16 %v525
        %v726 = vunpack.c.l.b16 %v526
        %v727 = vunpack.c.l.b16 %v527
        %v728 = vunpack.c.l.b16 %v528
        %v729 = vunpack.c.l.b16 %v529
        %v730 = vunpack.c.l.b16 %v530
        %v731 = vunpack.c.l.b16 %v531
        %v732 = vunpack.c.l.b16 %v532
        %v733 = vunpack.c.l.b16 %v533
        %v734 = vunpack.c.l.b16 %v534
        %v735 = vunpack.c.l.b16 %v535
        %v736 = vunpack.c.l.b16 %v536
        %v737 = vunpack.c.l.b16 %v537
        %v738 = vunpack.c.l.b16 %v538
        %v739 = vunpack.c.l.b16 %v539
        %v740 = vunpack.c.l.b16 %v540
        %v741 = vunpack.c.l.b16 %v541
        %v742 = vunpack.c.l.b16 %v542
        %v743 = vunpack.c.l.b16 %v543
        %v744 = vunpack.c.l.b16 %v544
        %v745 = vunpack.c.l.b16 %v545
        %v746 = vunpack.c.l.b16 %v546
        %v747 = vunpack.c.l.b16 %v547
        %v748 = vunpack.c.l.b16 %v548
        %v749 = vunpack.c.l.b16 %v549
        %v750 = vunpack.c.l.b16 %v550
        %v751 = vunpack.c.l.b16 %v551
        %v752 = vunpack.c.l.b16 %v552
        %v753 = vunpack.c.l.b16 %v553
        %v754 = vunpack.c.l.b16 %v554
        %v755 = vunpack.c.l.b16 %v555
        %v756 = vunpack.c.l.b16 %v556
        %v757 = vunpack.c.l.b16 %v557
        %v758 = vunpack.c.l.b16 %v558
        %v759 = vunpack.c.l.b16 %v559
        %v760 = vunpack.c.l.b16 %v560
        %v761 = vunpack.c.l.b16 %v561
        %v762 = vunpack.c.l.b16 %v562
        %v763 = vunpack.c.l.b16 %v563
        %v764 = vunpack.c.l.b16 %v564
        %v765 = vunpack.c.l.b16 %v565
        %v766 = vunpack.c.l.b16 %v566
        %v767 = vunpack.c.l.b16 %v567
        %v768 = vunpack.c.l.b16 %v568
        %v769 = vunpack.c.l.b16 %v569
        %v770 = vunpack.c.l.b16 %v570
        %v771 = vunpack.c.l.b16 %v571
        %v772 = vunpack.c.l.b16 %v572
        %v773 = vunpack.c.l.b16 %v573
        %v774 = vunpack.c.l.b16 %v574
        %v775 = vunpack.c.l.b16 %v575
        %v776 = vunpack.c.l.b16 %v576
        %v777 = vunpack.c.l.b16 %v577
        %v778 = vunpack.c.l.b16 %v578
        %v779 = vunpack.c.l.b16 %v579
        %v780 = vunpack.c.l.b16 %v580
        %v781 = vunpack.c.l.b16 %v581
        %v782 = vunpack.c.l.b16 %v582
        %v783 = vunpack.c.l.b16 %v583
        %v784 = vunpack.c.l.b16 %v584
        %v785 = vunpack.c.l.b16 %v585
        %v786 = vunpack.c.l.b16 %v586
        %v787 = vunpack.c.l.b16 %v587
        %v788 = vunpack.c.l.b16 %v588
        %v789 = vunpack.c.l.b16 %v589
        %v790 = vunpack.c.l.b16 %v590
        %v791 = vpack.c.b16 %v694, %v693
        %v792 = vpack.c.b16 %v696, %v695
        %v793 = vpack.c.b16 %v698, %v697
        %v794 = vpack.c.b16 %v700, %v699
        %v795 = vpack.c.b16 %v702, %v701
        %v796 = vpack.c.b16 %v704, %v703
        %v797 = vpack.c.b16 %v706, %v705
        %v798 = vpack.c.b16 %v708, %v707
        %v799 = vpack.c.b16 %v710, %v709
        %v800 = vpack.c.b16 %v712, %v711
        %v801 = vpack.c.b16 %v714, %v713
        %v802 = vpack.c.b16 %v716, %v715
        %v803 = vpack.c.b16 %v718, %v717
        %v804 = vpack.c.b16 %v720, %v719
        %v805 = vpack.c.b16 %v722, %v721
        %v806 = vpack.c.b16 %v724, %v723
        %v807 = vpack.c.b16 %v726, %v725
        %v808 = vpack.c.b16 %v728, %v727
        %v809 = vpack.c.b16 %v730, %v729
        %v810 = vpack.c.b16 %v732, %v731
        %v811 = vpack.c.b16 %v734, %v733
        %v812 = vpack.c.b16 %v736, %v735
        %v813 = vpack.c.b16 %v738, %v737
        %v814 = vpack.c.b16 %v740, %v739
        %v815 = vpack.c.b16 %v742, %v741
        %v816 = vpack.c.b16 %v744, %v743
        %v817 = vpack.c.b16 %v746, %v745
        %v818 = vpack.c.b16 %v748, %v747
        %v819 = vpack.c.b16 %v750, %v749
        %v820 = vpack.c.b16 %v752, %v751
        %v821 = vpack.c.b16 %v754, %v753
        %v822 = vpack.c.b16 %v756, %v755
        %v823 = vpack.c.b16 %v758, %v757
        %v824 = vpack.c.b16 %v760, %v759
        %v825 = vpack.c.b16 %v762, %v761
        %v826 = vpack.c.b16 %v764, %v763
        %v827 = vpack.c.b16 %v766, %v765
        %v828 = vpack.c.b16 %v768, %v767
        %v829 = vpack.c.b16 %v770, %v769
        %v830 = vpack.c.b16 %v772, %v771
        %v831 = vpack.c.b16 %v774, %v773
        %v832 = vpack.c.b16 %v776, %v775
        %v833 = vpack.c.b16 %v778, %v777
        %v834 = vpack.c.b16 %v780, %v779
        %v835 = vpack.c.b16 %v782, %v781
        %v836 = vpack.c.b16 %v784, %v783
        %v837 = vpack.c.b16 %v786, %v785
        %v838 = vpack.c.b16 %v788, %v787
        %v839 = vpack.c.b16 %v790, %v789
        %vm889 = vcmask 130048
        %v891 = vsel %vm889, %v492, 0
        %893 = vmatpush.bf16.msra.mxu0 %v798
        %894 = vmatpush.bf16.msra.mxu0 %v797
        %895 = vmatpush.bf16.msra.mxu0 %v796
        %896 = vmatpush.bf16.msra.mxu0 %v795
        %897 = vmatpush.bf16.msra.mxu0 %v794
        %898 = vmatpush.bf16.msra.mxu0 %v793
        %899 = vmatpush.bf16.msra.mxu0 %v792
        %900 = vmatpush.bf16.msra.mxu0 %v791
        %901 = vmatmul.bf16.gmra.mxu0 %v486
        %v902 = vpop.f32.mrf.mxu0
        %v903 = vadd.f32 %v593, %v902
        %v904 = vpop.f32.mrf.mxu0
        %v905 = vadd.f32 %v593, %v904
        %906 = vdwg.mxu0
        %907 = vmatpush.bf16.msra.mxu0 %v806
        %908 = vmatpush.bf16.msra.mxu0 %v805
        %909 = vmatpush.bf16.msra.mxu0 %v804
        %910 = vmatpush.bf16.msra.mxu0 %v803
        %911 = vmatpush.bf16.msra.mxu0 %v802
        %912 = vmatpush.bf16.msra.mxu0 %v801
        %913 = vmatpush.bf16.msra.mxu0 %v800
        %914 = vmatpush.bf16.msra.mxu0 %v799
        %915 = vmatmul.bf16.gmra.mxu0 %v487
        %v916 = vpop.f32.mrf.mxu0
        %v917 = vadd.f32 %v903, %v916
        %v918 = vpop.f32.mrf.mxu0
        %v919 = vadd.f32 %v905, %v918
        %920 = vdwg.mxu0
        %921 = vmatpush.bf16.msra.mxu0 %v814
        %922 = vmatpush.bf16.msra.mxu0 %v813
        %923 = vmatpush.bf16.msra.mxu0 %v812
        %924 = vmatpush.bf16.msra.mxu0 %v811
        %925 = vmatpush.bf16.msra.mxu0 %v810
        %926 = vmatpush.bf16.msra.mxu0 %v809
        %927 = vmatpush.bf16.msra.mxu0 %v808
        %928 = vmatpush.bf16.msra.mxu0 %v807
        %929 = vmatmul.bf16.gmra.mxu0 %v488
        %v930 = vpop.f32.mrf.mxu0
        %v931 = vadd.f32 %v917, %v930
        %v932 = vpop.f32.mrf.mxu0
        %v933 = vadd.f32 %v919, %v932
        %934 = vdwg.mxu0
        %935 = vmatpush.bf16.msra.mxu0 %v822
        %936 = vmatpush.bf16.msra.mxu0 %v821
        %937 = vmatpush.bf16.msra.mxu0 %v820
        %938 = vmatpush.bf16.msra.mxu0 %v819
        %939 = vmatpush.bf16.msra.mxu0 %v818
        %940 = vmatpush.bf16.msra.mxu0 %v817
        %941 = vmatpush.bf16.msra.mxu0 %v816
        %942 = vmatpush.bf16.msra.mxu0 %v815
        %943 = vmatmul.bf16.gmra.mxu0 %v489
        %v944 = vpop.f32.mrf.mxu0
        %v945 = vadd.f32 %v931, %v944
        %v946 = vpop.f32.mrf.mxu0
        %v947 = vadd.f32 %v933, %v946
        %948 = vdwg.mxu0
        %949 = vmatpush.bf16.msra.mxu0 %v830
        %950 = vmatpush.bf16.msra.mxu0 %v829
        %951 = vmatpush.bf16.msra.mxu0 %v828
        %952 = vmatpush.bf16.msra.mxu0 %v827
        %953 = vmatpush.bf16.msra.mxu0 %v826
        %954 = vmatpush.bf16.msra.mxu0 %v825
        %955 = vmatpush.bf16.msra.mxu0 %v824
        %956 = vmatpush.bf16.msra.mxu0 %v823
        %957 = vmatmul.bf16.gmra.mxu0 %v490
        %v958 = vpop.f32.mrf.mxu0
        %v959 = vadd.f32 %v945, %v958
        %v960 = vpop.f32.mrf.mxu0
        %v961 = vadd.f32 %v947, %v960
        %962 = vdwg.mxu0
        %963 = vmatpush.bf16.msra.mxu0 %v838
        %964 = vmatpush.bf16.msra.mxu0 %v837
        %965 = vmatpush.bf16.msra.mxu0 %v836
        %966 = vmatpush.bf16.msra.mxu0 %v835
        %967 = vmatpush.bf16.msra.mxu0 %v834
        %968 = vmatpush.bf16.msra.mxu0 %v833
        %969 = vmatpush.bf16.msra.mxu0 %v832
        %970 = vmatpush.bf16.msra.mxu0 %v831
        %971 = vmatmul.bf16.gmra.mxu0 %v491
        %v972 = vpop.f32.mrf.mxu0
        %v973 = vadd.f32 %v959, %v972
        %v974 = vpop.f32.mrf.mxu0
        %v975 = vadd.f32 %v961, %v974
        %976 = vdwg.mxu0
        %977 = vmatpush.bf16.msra.mxu0 0
        %978 = vmatpush.bf16.msra.mxu0 0
        %979 = vmatpush.bf16.msra.mxu0 0
        %980 = vmatpush.bf16.msra.mxu0 0
        %981 = vmatpush.bf16.msra.mxu0 0
        %982 = vmatpush.bf16.msra.mxu0 0
        %983 = vmatpush.bf16.msra.mxu0 0
        %984 = vmatpush.bf16.msra.mxu0 %v839
        %985 = vmatmul.bf16.gmra.mxu0 %v891
        %v986 = vpop.f32.mrf.mxu0
        %v987 = vadd.f32 %v973, %v986
        %v988 = vpop.f32.mrf.mxu0
        %v989 = vadd.f32 %v975, %v988
        %990 = vdwg.mxu0
        %v991 = vmax.f32 %v987, 0.0
        %v992 = vmax.f32 %v989, 0.0
        %v993 = vpack.c.bf16 %v992, %v991
        %v994 = vld [vmem:[%s4] sm:$0xf]
        %v995 = vld [vmem:[%s4 + $0x4] sm:$0xf]
        %v996 = vld [vmem:[%s4 + $0x8] sm:$0xf]
        %v997 = vld [vmem:[%s4 + $0xc] sm:$0xf]
        %v998 = vld [vmem:[%s4 + $0x10] sm:$0xf]
        %v999 = vld [vmem:[%s4 + $0x14] sm:$0xf]
        %v1000 = vld [vmem:[%s4 + $0x18] sm:$0xf]
        %v1001 = vld [vmem:[%s4 + $0x1c] sm:$0xf]
        %v1002 = vld [vmem:[#allocation2] sm:$0x1]
        %v1004 = vperm.slane %v1002, 0
        %v1014 = vunpack.c.l.b16 %v994
        %v1015 = vunpack.c.l.b16 %v995
        %v1016 = vunpack.c.l.b16 %v996
        %v1017 = vunpack.c.l.b16 %v997
        %v1018 = vunpack.c.l.b16 %v998
        %v1019 = vunpack.c.l.b16 %v999
        %v1020 = vunpack.c.l.b16 %v1000
        %v1021 = vunpack.c.l.b16 %v1001
        %v1022 = vpack.c.b16 %v1015, %v1014
        %v1023 = vpack.c.b16 %v1017, %v1016
        %v1024 = vpack.c.b16 %v1019, %v1018
        %v1025 = vpack.c.b16 %v1021, %v1020
        %vm1030 = vcmask 523264
        %v1032 = vsel %vm1030, %v993, 0
        %1034 = vmatpush.bf16.msra.mxu0 0
        %1035 = vmatpush.bf16.msra.mxu0 0
        %1036 = vmatpush.bf16.msra.mxu0 0
        %1037 = vmatpush.bf16.msra.mxu0 0
        %1038 = vmatpush.bf16.msra.mxu0 %v1025
        %1039 = vmatpush.bf16.msra.mxu0 %v1024
        %1040 = vmatpush.bf16.msra.mxu0 %v1023
        %1041 = vmatpush.bf16.msra.mxu0 %v1022
        %1042 = vmatmul.bf16.gmra.mxu0 %v1032
        %v1043 = vpop.f32.mrf.mxu0
        %v1044 = vadd.f32 %v1004, %v1043
        %v1045 = vpop.f32.mrf.mxu0
        %v1046 = vadd.f32 %v1004, %v1045
        %1047 = vdwg.mxu0
        %v1048 = vld [vmem:[%s467] sm:$0xff]
        %v1049 = vld [vmem:[%s467 + $0x8] sm:$0xff]
        %v1050 = vmul.f32 %v1044, 0.5
        %v1051 = vmul.f32 %v1046, 0.5
        %v1052 = vmul.f32 %v1050, 1.442695
        %v1053 = vpow.pop %v1052
        %v1054 = vmul.f32 %v1051, 1.442695
        %v1055 = vpow.pop %v1054
        %1058 = vrot.lane.b32.xlu0 %v1053, 96
        %v1059 = vpop.permute.xlu0 %1058
        %1060 = vrot.lane.b32.xlu0 %v1055, 96
        %v1061 = vpop.permute.xlu0 %1060
        %v1064 = vmul.f32 %v1048, %v1059
        %v1065 = vmul.f32 %v1049, %v1061
        %v1066 = vadd.f32 %v1044, %v1064
        %v1067 = vadd.f32 %v1046, %v1065
        %v1068 = vpack.c.bf16 %v1067, %v1066
        %v1069 = vld [vmem:[#allocation5] sm:$0xf]
        %v1070 = vld [vmem:[#allocation5 + $0x4] sm:$0xf]
        %v1071 = vld [vmem:[#allocation5 + $0x8] sm:$0xf]
        %v1072 = vld [vmem:[#allocation5 + $0xc] sm:$0xf]
        %v1073 = vld [vmem:[#allocation7] sm:$0x1]
        %v1075 = vperm.slane %v1073, 0
        %v1081 = vunpack.c.l.b16 %v1069
        %v1082 = vunpack.c.l.b16 %v1070
        %v1083 = vunpack.c.l.b16 %v1071
        %v1084 = vunpack.c.l.b16 %v1072
        %v1085 = vpack.c.b16 %v1082, %v1081
        %v1086 = vpack.c.b16 %v1084, %v1083
        %vm1089 = vcmask 261120
        %v1091 = vsel %vm1089, %v1068, 0
        %1093 = vmatpush.bf16.msra.mxu0 0
        %1094 = vmatpush.bf16.msra.mxu0 0
        %1095 = vmatpush.bf16.msra.mxu0 0
        %1096 = vmatpush.bf16.msra.mxu0 0
        %1097 = vmatpush.bf16.msra.mxu0 0
        %1098 = vmatpush.bf16.msra.mxu0 0
        %1099 = vmatpush.bf16.msra.mxu0 %v1086
        %1100 = vmatpush.bf16.msra.mxu0 %v1085
        %1101 = vmatmul.bf16.gmra.mxu0 %v1091
        %v1102 = vpop.f32.mrf.mxu0
        %v1103 = vadd.f32 %v1075, %v1102
        %v1104 = vpop.f32.mrf.mxu0
        %v1105 = vadd.f32 %v1075, %v1104
        %1106 = vdwg.mxu0
        %v1107 = vmax.f32 %v1103, 0.0
        %v1108 = vmax.f32 %v1105, 0.0
        %v1109 = vpack.c.bf16 %v1108, %v1107
        %v1110 = vld [vmem:[%s8] sm:$0xff]
        %v1111 = vld [vmem:[%s8 + $0x8] sm:$0xff]
        %v1112 = vld [vmem:[%s8 + $0x10] sm:$0xff]
        %v1113 = vld [vmem:[%s8 + $0x18] sm:$0xf]
        %v1114 = vld [vmem:[%s8 + $0x1c] sm:$0xff]
        %v1115 = vld [vmem:[%s8 + $0x24] sm:$0xff]
        %v1116 = vld [vmem:[%s8 + $0x2c] sm:$0xff]
        %v1117 = vld [vmem:[%s8 + $0x34] sm:$0xf]
        %v1118 = vld [vmem:[%s8 + $0x38] sm:$0xff]
        %v1119 = vld [vmem:[%s8 + $0x40] sm:$0xff]
        %v1120 = vld [vmem:[%s8 + $0x48] sm:$0xff]
        %v1121 = vld [vmem:[%s8 + $0x50] sm:$0xf]
        %v1122 = vld [vmem:[%s8 + $0x54] sm:$0xff]
        %v1123 = vld [vmem:[%s8 + $0x5c] sm:$0xff]
        %v1124 = vld [vmem:[%s8 + $0x64] sm:$0xff]
        %v1125 = vld [vmem:[%s8 + $0x6c] sm:$0xf]
        %v1126 = vld [vmem:[%s8 + $0x70] sm:$0xff]
        %v1127 = vld [vmem:[%s8 + $0x78] sm:$0xff]
        %v1128 = vld [vmem:[%s8 + $0x80] sm:$0xff]
        %v1129 = vld [vmem:[%s8 + $0x88] sm:$0xf]
        %v1130 = vld [vmem:[%s8 + $0x8c] sm:$0xff]
        %v1131 = vld [vmem:[%s8 + $0x94] sm:$0xff]
        %v1132 = vld [vmem:[%s8 + $0x9c] sm:$0xff]
        %v1133 = vld [vmem:[%s8 + $0xa4] sm:$0xf]
        %v1134 = vld [vmem:[%s8 + $0xa8] sm:$0xff]
        %v1135 = vld [vmem:[%s8 + $0xb0] sm:$0xff]
        %v1136 = vld [vmem:[%s8 + $0xb8] sm:$0xff]
        %v1137 = vld [vmem:[%s8 + $0xc0] sm:$0xf]
        %v1138 = vld [vmem:[%s8 + $0xc4] sm:$0xff]
        %v1139 = vld [vmem:[%s8 + $0xcc] sm:$0xff]
        %v1140 = vld [vmem:[%s8 + $0xd4] sm:$0xff]
        %v1141 = vld [vmem:[%s8 + $0xdc] sm:$0xf]
        %v1142 = vld [vmem:[%s9] sm:$0xff]
        %v1144 = vperm.slane %v1142, 0
        %v1145 = vperm.slane %v1142, 1
        %v1146 = vperm.slane %v1142, 2
        %v1147 = vperm.slane %v1142, 3
        %v1148 = vperm.slane %v1142, 4
        %v1149 = vperm.slane %v1142, 5
        %v1150 = vperm.slane %v1142, 6
        %v1190 = vunpack.c.l.b16 %v1110
        %v1191 = vunpack.c.h.b16 %v1110
        %v1192 = vunpack.c.l.b16 %v1111
        %v1193 = vunpack.c.h.b16 %v1111
        %v1194 = vunpack.c.l.b16 %v1112
        %v1195 = vunpack.c.h.b16 %v1112
        %v1196 = vunpack.c.l.b16 %v1113
        %v1197 = vunpack.c.l.b16 %v1114
        %v1198 = vunpack.c.h.b16 %v1114
        %v1199 = vunpack.c.l.b16 %v1115
        %v1200 = vunpack.c.h.b16 %v1115
        %v1201 = vunpack.c.l.b16 %v1116
        %v1202 = vunpack.c.h.b16 %v1116
        %v1203 = vunpack.c.l.b16 %v1117
        %v1204 = vunpack.c.l.b16 %v1118
        %v1205 = vunpack.c.h.b16 %v1118
        %v1206 = vunpack.c.l.b16 %v1119
        %v1207 = vunpack.c.h.b16 %v1119
        %v1208 = vunpack.c.l.b16 %v1120
        %v1209 = vunpack.c.h.b16 %v1120
        %v1210 = vunpack.c.l.b16 %v1121
        %v1211 = vunpack.c.l.b16 %v1122
        %v1212 = vunpack.c.h.b16 %v1122
        %v1213 = vunpack.c.l.b16 %v1123
        %v1214 = vunpack.c.h.b16 %v1123
        %v1215 = vunpack.c.l.b16 %v1124
        %v1216 = vunpack.c.h.b16 %v1124
        %v1217 = vunpack.c.l.b16 %v1125
        %v1218 = vunpack.c.l.b16 %v1126
        %v1219 = vunpack.c.h.b16 %v1126
        %v1220 = vunpack.c.l.b16 %v1127
        %v1221 = vunpack.c.h.b16 %v1127
        %v1222 = vunpack.c.l.b16 %v1128
        %v1223 = vunpack.c.h.b16 %v1128
        %v1224 = vunpack.c.l.b16 %v1129
        %v1225 = vunpack.c.l.b16 %v1130
        %v1226 = vunpack.c.h.b16 %v1130
        %v1227 = vunpack.c.l.b16 %v1131
        %v1228 = vunpack.c.h.b16 %v1131
        %v1229 = vunpack.c.l.b16 %v1132
        %v1230 = vunpack.c.h.b16 %v1132
        %v1231 = vunpack.c.l.b16 %v1133
        %v1232 = vunpack.c.l.b16 %v1134
        %v1233 = vunpack.c.h.b16 %v1134
        %v1234 = vunpack.c.l.b16 %v1135
        %v1235 = vunpack.c.h.b16 %v1135
        %v1236 = vunpack.c.l.b16 %v1136
        %v1237 = vunpack.c.h.b16 %v1136
        %v1238 = vunpack.c.l.b16 %v1137
        %v1239 = vunpack.c.l.b16 %v1138
        %v1240 = vunpack.c.h.b16 %v1138
        %v1241 = vunpack.c.l.b16 %v1139
        %v1242 = vunpack.c.h.b16 %v1139
        %v1243 = vunpack.c.l.b16 %v1140
        %v1244 = vunpack.c.h.b16 %v1140
        %v1245 = vunpack.c.l.b16 %v1141
        %v1246 = vpack.c.b16 %v1197, %v1190
        %v1247 = vpack.c.b16 %v1198, %v1191
        %v1248 = vpack.c.b16 %v1199, %v1192
        %v1249 = vpack.c.b16 %v1200, %v1193
        %v1250 = vpack.c.b16 %v1201, %v1194
        %v1251 = vpack.c.b16 %v1202, %v1195
        %v1252 = vpack.c.b16 %v1203, %v1196
        %v1253 = vpack.c.b16 %v1211, %v1204
        %v1254 = vpack.c.b16 %v1212, %v1205
        %v1255 = vpack.c.b16 %v1213, %v1206
        %v1256 = vpack.c.b16 %v1214, %v1207
        %v1257 = vpack.c.b16 %v1215, %v1208
        %v1258 = vpack.c.b16 %v1216, %v1209
        %v1259 = vpack.c.b16 %v1217, %v1210
        %v1260 = vpack.c.b16 %v1225, %v1218
        %v1261 = vpack.c.b16 %v1226, %v1219
        %v1262 = vpack.c.b16 %v1227, %v1220
        %v1263 = vpack.c.b16 %v1228, %v1221
        %v1264 = vpack.c.b16 %v1229, %v1222
        %v1265 = vpack.c.b16 %v1230, %v1223
        %v1266 = vpack.c.b16 %v1231, %v1224
        %v1267 = vpack.c.b16 %v1239, %v1232
        %v1268 = vpack.c.b16 %v1240, %v1233
        %v1269 = vpack.c.b16 %v1241, %v1234
        %v1270 = vpack.c.b16 %v1242, %v1235
        %v1271 = vpack.c.b16 %v1243, %v1236
        %v1272 = vpack.c.b16 %v1244, %v1237
        %v1273 = vpack.c.b16 %v1245, %v1238
        %v1303 = vsel %vm1030, %v1109, 0
        %1305 = vmatpush.bf16.msra.mxu0 0
        %1306 = vmatpush.bf16.msra.mxu0 0
        %1307 = vmatpush.bf16.msra.mxu0 0
        %1308 = vmatpush.bf16.msra.mxu0 0
        %1309 = vmatpush.bf16.msra.mxu0 %v1267
        %1310 = vmatpush.bf16.msra.mxu0 %v1260
        %1311 = vmatpush.bf16.msra.mxu0 %v1253
        %1312 = vmatpush.bf16.msra.mxu0 %v1246
        %1313 = vmatmul.bf16.gmra.mxu0 %v1303
        %v1314 = vpop.f32.mrf.mxu0
        %v1315 = vadd.f32 %v1144, %v1314
        %v1316 = vpop.f32.mrf.mxu0
        %v1317 = vadd.f32 %v1144, %v1316
        %1318 = vdwg.mxu0
        %1319 = vmatpush.bf16.msra.mxu0 0
        %1320 = vmatpush.bf16.msra.mxu0 0
        %1321 = vmatpush.bf16.msra.mxu0 0
        %1322 = vmatpush.bf16.msra.mxu0 0
        %1323 = vmatpush.bf16.msra.mxu0 %v1268
        %1324 = vmatpush.bf16.msra.mxu0 %v1261
        %1325 = vmatpush.bf16.msra.mxu0 %v1254
        %1326 = vmatpush.bf16.msra.mxu0 %v1247
        %1327 = vmatmul.bf16.gmra.mxu0 %v1303
        %v1328 = vpop.f32.mrf.mxu0
        %v1329 = vadd.f32 %v1145, %v1328
        %v1330 = vpop.f32.mrf.mxu0
        %v1331 = vadd.f32 %v1145, %v1330
        %1332 = vdwg.mxu0
        %1333 = vmatpush.bf16.msra.mxu0 0
        %1334 = vmatpush.bf16.msra.mxu0 0
        %1335 = vmatpush.bf16.msra.mxu0 0
        %1336 = vmatpush.bf16.msra.mxu0 0
        %1337 = vmatpush.bf16.msra.mxu0 %v1269
        %1338 = vmatpush.bf16.msra.mxu0 %v1262
        %1339 = vmatpush.bf16.msra.mxu0 %v1255
        %1340 = vmatpush.bf16.msra.mxu0 %v1248
        %1341 = vmatmul.bf16.gmra.mxu0 %v1303
        %v1342 = vpop.f32.mrf.mxu0
        %v1343 = vadd.f32 %v1146, %v1342
        %v1344 = vpop.f32.mrf.mxu0
        %v1345 = vadd.f32 %v1146, %v1344
        %1346 = vdwg.mxu0
        %1347 = vmatpush.bf16.msra.mxu0 0
        %1348 = vmatpush.bf16.msra.mxu0 0
        %1349 = vmatpush.bf16.msra.mxu0 0
        %1350 = vmatpush.bf16.msra.mxu0 0
        %1351 = vmatpush.bf16.msra.mxu0 %v1270
        %1352 = vmatpush.bf16.msra.mxu0 %v1263
        %1353 = vmatpush.bf16.msra.mxu0 %v1256
        %1354 = vmatpush.bf16.msra.mxu0 %v1249
        %1355 = vmatmul.bf16.gmra.mxu0 %v1303
        %v1356 = vpop.f32.mrf.mxu0
        %v1357 = vadd.f32 %v1147, %v1356
        %v1358 = vpop.f32.mrf.mxu0
        %v1359 = vadd.f32 %v1147, %v1358
        %1360 = vdwg.mxu0
        %1361 = vmatpush.bf16.msra.mxu0 0
        %1362 = vmatpush.bf16.msra.mxu0 0
        %1363 = vmatpush.bf16.msra.mxu0 0
        %1364 = vmatpush.bf16.msra.mxu0 0
        %1365 = vmatpush.bf16.msra.mxu0 %v1271
        %1366 = vmatpush.bf16.msra.mxu0 %v1264
        %1367 = vmatpush.bf16.msra.mxu0 %v1257
        %1368 = vmatpush.bf16.msra.mxu0 %v1250
        %1369 = vmatmul.bf16.gmra.mxu0 %v1303
        %v1370 = vpop.f32.mrf.mxu0
        %v1371 = vadd.f32 %v1148, %v1370
        %v1372 = vpop.f32.mrf.mxu0
        %v1373 = vadd.f32 %v1148, %v1372
        %1374 = vdwg.mxu0
        %1375 = vmatpush.bf16.msra.mxu0 0
        %1376 = vmatpush.bf16.msra.mxu0 0
        %1377 = vmatpush.bf16.msra.mxu0 0
        %1378 = vmatpush.bf16.msra.mxu0 0
        %1379 = vmatpush.bf16.msra.mxu0 %v1272
        %1380 = vmatpush.bf16.msra.mxu0 %v1265
        %1381 = vmatpush.bf16.msra.mxu0 %v1258
        %1382 = vmatpush.bf16.msra.mxu0 %v1251
        %1383 = vmatmul.bf16.gmra.mxu0 %v1303
        %v1384 = vpop.f32.mrf.mxu0
        %v1385 = vadd.f32 %v1149, %v1384
        %v1386 = vpop.f32.mrf.mxu0
        %v1387 = vadd.f32 %v1149, %v1386
        %1388 = vdwg.mxu0
        %1389 = vmatpush.bf16.msra.mxu0 0
        %1390 = vmatpush.bf16.msra.mxu0 0
        %1391 = vmatpush.bf16.msra.mxu0 0
        %1392 = vmatpush.bf16.msra.mxu0 0
        %1393 = vmatpush.bf16.msra.mxu0 %v1273
        %1394 = vmatpush.bf16.msra.mxu0 %v1266
        %1395 = vmatpush.bf16.msra.mxu0 %v1259
        %1396 = vmatpush.bf16.msra.mxu0 %v1252
        %1397 = vmatmul.bf16.gmra.mxu0 %v1303
        %v1398 = vpop.f32.mrf.mxu0
        %v1399 = vadd.f32 %v1150, %v1398
        %v1400 = vpop.f32.mrf.mxu0
        %v1401 = vadd.f32 %v1150, %v1400
        %1402 = vdwg.mxu0
        %1403 = vst [vmem:[%s448] sm:$0xff] %v1044
        %1404 = vst [vmem:[%s448 + $0x8] sm:$0xff] %v1046
        %v1405 = vmul.f32 %v1315, 0.5
        %v1406 = vmul.f32 %v1329, 0.5
        %v1407 = vmul.f32 %v1343, 0.5
        %v1408 = vmul.f32 %v1357, 0.5
        %v1409 = vmul.f32 %v1371, 0.5
        %v1410 = vmul.f32 %v1385, 0.5
        %v1411 = vmul.f32 %v1399, 0.5
        %v1412 = vmul.f32 %v1317, 0.5
        %v1413 = vmul.f32 %v1331, 0.5
        %v1414 = vmul.f32 %v1345, 0.5
        %v1415 = vmul.f32 %v1359, 0.5
        %v1416 = vmul.f32 %v1373, 0.5
        %v1417 = vmul.f32 %v1387, 0.5
        %v1418 = vmul.f32 %v1401, 0.5
        %v1419 = vtanh.pop %v1405
        %v1420 = vtanh.pop %v1406
        %v1421 = vtanh.pop %v1407
        %v1422 = vtanh.pop %v1408
        %v1423 = vtanh.pop %v1409
        %v1424 = vtanh.pop %v1410
        %v1425 = vtanh.pop %v1411
        %v1426 = vtanh.pop %v1412
        %v1427 = vtanh.pop %v1413
        %v1428 = vtanh.pop %v1414
        %v1429 = vtanh.pop %v1415
        %v1430 = vtanh.pop %v1416
        %v1431 = vtanh.pop %v1417
        %v1432 = vtanh.pop %v1418
        %v1433 = vmul.f32 %v1419, 0.5
        %v1434 = vmul.f32 %v1420, 0.5
        %v1435 = vmul.f32 %v1421, 0.5
        %v1436 = vmul.f32 %v1422, 0.5
        %v1437 = vmul.f32 %v1423, 0.5
        %v1438 = vmul.f32 %v1424, 0.5
        %v1439 = vmul.f32 %v1425, 0.5
        %v1440 = vmul.f32 %v1426, 0.5
        %v1441 = vmul.f32 %v1427, 0.5
        %v1442 = vmul.f32 %v1428, 0.5
        %v1443 = vmul.f32 %v1429, 0.5
        %v1444 = vmul.f32 %v1430, 0.5
        %v1445 = vmul.f32 %v1431, 0.5
        %v1446 = vmul.f32 %v1432, 0.5
        %v1447 = vadd.f32 %v1433, 0.5
        %v1448 = vadd.f32 %v1434, 0.5
        %v1449 = vadd.f32 %v1435, 0.5
        %v1450 = vadd.f32 %v1436, 0.5
        %v1451 = vadd.f32 %v1437, 0.5
        %v1452 = vadd.f32 %v1438, 0.5
        %v1453 = vadd.f32 %v1439, 0.5
        %v1454 = vadd.f32 %v1440, 0.5
        %v1455 = vadd.f32 %v1441, 0.5
        %v1456 = vadd.f32 %v1442, 0.5
        %v1457 = vadd.f32 %v1443, 0.5
        %v1458 = vadd.f32 %v1444, 0.5
        %v1459 = vadd.f32 %v1445, 0.5
        %v1460 = vadd.f32 %v1446, 0.5
        %v1461 = vpack.c.bf16 %v1448, %v1447
        %v1462 = vpack.c.bf16 %v1450, %v1449
        %v1463 = vpack.c.bf16 %v1452, %v1451
        %v1464 = vpack.c.bf16 %v1453, %v1453
        %v1465 = vpack.c.bf16 %v1455, %v1454
        %v1466 = vpack.c.bf16 %v1457, %v1456
        %v1467 = vpack.c.bf16 %v1459, %v1458
        %v1468 = vpack.c.bf16 %v1460, %v1460
        %1469 = vst [vmem:[%s455] sm:$0xff] %v1461
        %1470 = vst [vmem:[%s455 + $0x8] sm:$0xff] %v1462
        %1471 = vst [vmem:[%s455 + $0x10] sm:$0xff] %v1463
        %1472 = vst [vmem:[%s455 + $0x18] sm:$0xf] %v1464
        %1473 = vst [vmem:[%s455 + $0x1c] sm:$0xff] %v1465
        %1474 = vst [vmem:[%s455 + $0x24] sm:$0xff] %v1466
        %1475 = vst [vmem:[%s455 + $0x2c] sm:$0xff] %v1467
        %1476 = vst [vmem:[%s455 + $0x34] sm:$0xf] %v1468
        %s1477 = sand.u32 %s259, 1
        %s1478 = scalar_lea.sflag [#allocation4], %s1477
        %s1479 = sand.u32 %s259, 1
        %s1480 = smul.addr %s1479, 16
        %s1481 = scalar_lea.vmem [#allocation8], %s1480
        %s1482 = sand.u32 %s285, 1
        %s1483 = scalar_lea.sflag [#allocation10], %s1482
        %s1484 = sand.u32 %s285, 1
        %s1485 = smul.addr %s1484, 56
        %s1486 = scalar_lea.vmem [#allocation9], %s1485
        // Predicated region
        $region73: #{tpu_custom_call.1} parent=59 // pred_check
          %p1487 = pneg %p269
        $region74: #{tpu_custom_call.1} parent=59 // pred_check_branch
          %1489 = sbr.rel (%p1487) target = $region76
        $region75: #{tpu_custom_call.1} parent=59 // pred_region
          %s1490 = smul.u32 2, %s31
          %1492 = vsyncadd %s1478, 0
          %s1493 = smul.addr %s1490, 8
          %s1494 = scalar_lea.hbm %s10, %s1493
          %s1495 = sshll.u32 %s1481, 4
          %s1496 = int_to_ptr.vmem [resolvable:$true] %s1495
          %s1497 = sshll.u32 %s1494, 4
          %s1498 = int_to_ptr.hbm [resolvable:$true] %s1497
          %1503 = dma.vmem_to_hbm [thread:$0]  %s1496, 256, %s1498, %s1478, 128, 128, 8
        $region76: #{tpu_custom_call.1} parent=59 // pred_fallthru
          _
        // Predicated region
        $region77: #{tpu_custom_call.1} parent=59 // pred_check
          %p1504 = pneg %p295
        $region78: #{tpu_custom_call.1} parent=59 // pred_check_branch
          %1506 = sbr.rel (%p1504) target = $region80
        $region79: #{tpu_custom_call.1} parent=59 // pred_region
          %s1507 = smul.u32 2, %s31
          %1509 = vsyncadd %s1483, 0
          %s1510 = smul.addr %s1507, 7
          %s1511 = smul.addr %s1510, 4
          %s1512 = scalar_lea.hbm %s11, %s1511
          %s1513 = sshll.u32 %s1486, 4
          %s1514 = int_to_ptr.vmem [resolvable:$true] %s1513
          %s1515 = sshll.u32 %s1512, 4
          %s1516 = int_to_ptr.hbm [resolvable:$true] %s1515
          %1521 = dma.vmem_to_hbm [thread:$0]  %s1514, 896, %s1516, %s1483, 448, 448, 28
        $region80: #{tpu_custom_call.1} parent=59 // pred_fallthru
          _
      $region60: #{tpu_custom_call.1} parent=5 // pred_fallthru
        _
      %p1522 = scmp.le.s32.totalorder 2, %s26
      // Predicated region
      $region81: #{tpu_custom_call.1} parent=5 // pred_check
        %p1523 = pneg %p1522
      $region82: #{tpu_custom_call.1} parent=5 // pred_check_branch
        %1525 = sbr.rel (%p1523) target = $region84
      $region83: #{tpu_custom_call.1} parent=5 // pred_region
        %s1526 = ssub.s32 %s26, 2
        // Predicated region
        $region85: #{tpu_custom_call.1} parent=83 // pred_check
          %p1527 = pneg %p275
        $region86: #{tpu_custom_call.1} parent=83 // pred_check_branch
          %1529 = sbr.rel (%p1527) target = $region88
        $region87: #{tpu_custom_call.1} parent=83 // pred_region
          %s1530 = sand.u32 %s260, 1
          %s1531 = scalar_lea.sflag [#allocation4], %s1530
          %s1532 = sand.u32 %s260, 1
          %s1533 = smul.addr %s1532, 16
          %s1534 = scalar_lea.vmem [#allocation8], %s1533
          %1536 = dma.done %s1531, 256
        $region88: #{tpu_custom_call.1} parent=83 // pred_fallthru
          _
        // Predicated region
        $region89: #{tpu_custom_call.1} parent=83 // pred_check
          %p1537 = pneg %p301
        $region90: #{tpu_custom_call.1} parent=83 // pred_check_branch
          %1539 = sbr.rel (%p1537) target = $region92
        $region91: #{tpu_custom_call.1} parent=83 // pred_region
          %s1540 = sand.u32 %s286, 1
          %s1541 = scalar_lea.sflag [#allocation10], %s1540
          %s1542 = sand.u32 %s286, 1
          %s1543 = smul.addr %s1542, 56
          %s1544 = scalar_lea.vmem [#allocation9], %s1543
          %1546 = dma.done %s1541, 896
        $region92: #{tpu_custom_call.1} parent=83 // pred_fallthru
          _
      $region84: #{tpu_custom_call.1} parent=5 // pred_fallthru
        _
    $region6: #{tpu_custom_call.1} parent=1 // loop_footer
      %s30 = sadd.s32 1, %s26
    $region7: #{tpu_custom_call.1} parent=1 // loop_footer_branch
      %25 = sbr.rel target = $region3
    $region8: #{tpu_custom_call.1} parent=1 // loop_exit
      _
    %1547 = vsyncpa [#allocation3], 1
    %s1548 = scalar_lea.sflag [#allocation3], 1
    %1549 = vsyncpa %s1548, 1
    %1550 = vsyncpa [#allocation6], 1
    %1551 = vsyncpa [#allocation4], 1
    %s1552 = scalar_lea.sflag [#allocation4], 1
    %1553 = vsyncpa %s1552, 1
    %1554 = vsyncpa [#allocation10], 1
    %s1555 = scalar_lea.sflag [#allocation10], 1
    %1556 = vsyncpa %s1555, 1

</llo_original>
